<compile_context>
chip_gen: v7x
topology: tpu7x:2x2x1
jax: 0.10.0
libtpu: 0.0.40
codegen_flags: <defaults>
</compile_context>

<pallas_src>
import math
import jax
import jax.numpy as jnp
from jax.experimental import pallas as pl
from jax.experimental.pallas import tpu as pltpu

# ---------------- configuration (small shapes consistent with the module) ----------
NUM_PROP     = 16
NUM_HIST     = 13                  # frames fed to forward(); forward keeps [:, 5:, :]
HIST_KEEP    = NUM_HIST - 5        # 8 frames -> encoder input = 8 * 16 = 128
ENC_IN       = HIST_KEEP * NUM_PROP
MLP_ENC_DIMS = (64, 64)
LATENT_DIM   = 16
ENC_OUT      = LATENT_DIM + 7      # 23
NUM_ACTIONS  = 12
HIDDEN       = 128                 # MixedMlp hidden_size
NUM_EXPERTS  = 4
GATE_HIDDEN  = 64
ACTOR_IN     = ENC_OUT + NUM_PROP  # 39 = cat(latent, obs)
BATCH        = 8

# lane-dense padding widths
LAT_PAD = 128                      # latent padded to a full vreg lane width
OBS_PAD = 128                      # obs padded likewise
ACT_PAD = 128                      # per-expert action block (== HIDDEN so all three
                                   # stacked expert matmuls are uniformly (.., 4*128))
VEC_W   = NUM_EXPERTS * HIDDEN     # 512
VEC_ROWS = 16                      # vector slab rows padded to a sublane multiple

# vector-slab row indices
(R_EB1, R_LN1G, R_LN1B, R_EB2, R_LN2G, R_LN2B,
 R_EB3, R_BG, R_GB2, R_B1, R_B2, R_B3) = range(12)

# enc64 slab row offsets: [ew1 ; ew2 ; fused-gate W]
E64_EW1 = 0
E64_EW2 = ENC_IN                       # 128
E64_WG  = ENC_IN + MLP_ENC_DIMS[0]     # 192
# enc128 slab row offsets: [ew3 (lane-padded) ; gw2 (real cols 0:NUM_EXPERTS)]
E128_EW3 = 0
E128_GW2 = MLP_ENC_DIMS[1]             # 64


# ---------------- small math helpers (used inside the kernel and the reference) ----
def _elu(x):
    return jnp.where(x > 0, x, jnp.exp(jnp.minimum(x, 0.0)) - 1.0)


def _layernorm(x, g, b, eps=1e-5):
    mu = jnp.mean(x, axis=-1, keepdims=True)
    var = jnp.mean((x - mu) * (x - mu), axis=-1, keepdims=True)
    return (x - mu) * jax.lax.rsqrt(var + eps) * g + b


# ---------------- the Pallas kernel: whole forward hot path ------------------------
def _actor_fwd_kernel(act_ref, enc64_ref, enc128_ref, xpt_ref, vec_ref, out_ref):
    f32 = jnp.float32
    bsz = act_ref.shape[0]

    def vrow(r, w=VEC_W):
        return vec_ref[r:r + 1, :w]                       # (1, w) bias / gamma / beta

    x   = act_ref[:, :ENC_IN]                             # (B, 128) flattened history
    obs = act_ref[:, ENC_IN:ENC_IN + OBS_PAD]             # (B, 128) zero-padded obs

    # --- mlp_encoder: (Linear -> LayerNorm -> ELU) x2 ---
    h = jnp.dot(x, enc64_ref[E64_EW1:E64_EW1 + ENC_IN, :],
                preferred_element_type=f32) + vrow(R_EB1, MLP_ENC_DIMS[0])
    h = _elu(_layernorm(h, vrow(R_LN1G, MLP_ENC_DIMS[0]), vrow(R_LN1B, MLP_ENC_DIMS[0])))
    h = jnp.dot(h, enc64_ref[E64_EW2:E64_EW2 + MLP_ENC_DIMS[0], :],
                preferred_element_type=f32) + vrow(R_EB2, MLP_ENC_DIMS[1])
    h = _elu(_layernorm(h, vrow(R_LN2G, MLP_ENC_DIMS[1]), vrow(R_LN2B, MLP_ENC_DIMS[1])))

    # --- gating network (first layer fused with the encoder output Linear) ---
    gh = _elu(jnp.dot(h, enc64_ref[E64_WG:E64_WG + MLP_ENC_DIMS[1], :],
                      preferred_element_type=f32) + vrow(R_BG, GATE_HIDDEN))
    glog = (jnp.dot(gh, enc128_ref[E128_GW2:E128_GW2 + GATE_HIDDEN, :NUM_EXPERTS],
                    preferred_element_type=f32) + vrow(R_GB2, NUM_EXPERTS))  # (B, E)
    glog = glog - jnp.max(glog, axis=-1, keepdims=True)
    ge = jnp.exp(glog)
    coeff = ge * pl.reciprocal(jnp.sum(ge, axis=-1, keepdims=True), approx=True)  # (B, E)

    # --- encoder output (latent), lane-padded to 128 ---
    latent = jnp.dot(h, enc128_ref[E128_EW3:E128_EW3 + MLP_ENC_DIMS[1], :],
                     preferred_element_type=f32) + vrow(R_EB3, LAT_PAD)      # (B, 128)

    # hoisted per-expert coefficient broadcasts (reused by all three layers)
    cb = [jnp.broadcast_to(coeff[:, e:e + 1], (bsz, HIDDEN)) for e in range(NUM_EXPERTS)]

    def mix(y, act):
        # y: (B, 4*128) N-stacked expert outputs -> coefficient-weighted sum (B, 128)
        m = cb[0] * y[:, 0:HIDDEN]
        for e in range(1, NUM_EXPERTS):
            m = m + cb[e] * y[:, e * HIDDEN:(e + 1) * HIDDEN]
        return _elu(m) if act else m

    # --- expert layer 1: input is cat(latent, obs); weight pre-split + N-stacked ---
    y1 = (jnp.dot(latent, xpt_ref[0], preferred_element_type=f32)
          + jnp.dot(obs, xpt_ref[1], preferred_element_type=f32)
          + vrow(R_B1))
    h1 = mix(y1, True)

    # --- expert layer 2 ---
    y2 = jnp.dot(h1, xpt_ref[2], preferred_element_type=f32) + vrow(R_B2)
    h2 = mix(y2, True)

    # --- expert layer 3 (output, no activation); lane-padded to 128 actions ---
    y3 = jnp.dot(h2, xpt_ref[3], preferred_element_type=f32) + vrow(R_B3)
    out_ref[...] = mix(y3, False)


# ---------------- parameter construction (deterministic, torch-like init) ----------
def init_params(key):
    keys = iter(jax.random.split(key, 16))

    def linear(fan_in, fan_out):
        kw, kb = jax.random.split(next(keys))
        lim = 1.0 / math.sqrt(fan_in)
        w = jax.random.uniform(kw, (fan_in, fan_out), jnp.float32, -lim, lim)
        b = jax.random.uniform(kb, (1, fan_out), jnp.float32, -lim, lim)
        return w, b

    def expert(fan_in, fan_out):
        kw, kb = jax.random.split(next(keys))
        lim = 1.0 / math.sqrt(fan_in)
        w = jax.random.uniform(kw, (NUM_EXPERTS, fan_in, fan_out), jnp.float32, -lim, lim)
        b = jax.random.uniform(kb, (NUM_EXPERTS, fan_out), jnp.float32, -lim, lim)
        return w, b

    p = {}
    p["ew1"], p["eb1"] = linear(ENC_IN, MLP_ENC_DIMS[0])
    p["ln1g"] = jnp.ones((1, MLP_ENC_DIMS[0]), jnp.float32)
    p["ln1b"] = jnp.zeros((1, MLP_ENC_DIMS[0]), jnp.float32)
    p["ew2"], p["eb2"] = linear(MLP_ENC_DIMS[0], MLP_ENC_DIMS[1])
    p["ln2g"] = jnp.ones((1, MLP_ENC_DIMS[1]), jnp.float32)
    p["ln2b"] = jnp.zeros((1, MLP_ENC_DIMS[1]), jnp.float32)
    p["ew3"], p["eb3"] = linear(MLP_ENC_DIMS[1], ENC_OUT)
    p["gw1"], p["gb1"] = linear(ENC_OUT, GATE_HIDDEN)
    p["gw2"], p["gb2"] = linear(GATE_HIDDEN, NUM_EXPERTS)
    p["xw1"], p["xb1"] = expert(ACTOR_IN, HIDDEN)
    p["xw2"], p["xb2"] = expert(HIDDEN, HIDDEN)
    p["xw3"], p["xb3"] = expert(HIDDEN, NUM_ACTIONS)
    return p


# ---------------- wrapper-side parameter packing (done once) -----------------------
def _pad2(a, rows, cols):
    return jnp.pad(a, ((0, rows - a.shape[0]), (0, cols - a.shape[1])))


def _vec_row(v):
    v = jnp.reshape(v, (1, -1))
    return jnp.pad(v, ((0, 0), (0, VEC_W - v.shape[1])))


def pack_params(p):
    E, H = NUM_EXPERTS, HIDDEN

    # gate layer-1 fused into the encoder output Linear
    wg = p["ew3"] @ p["gw1"]                                 # (64, 64)
    bg = p["eb3"] @ p["gw1"] + p["gb1"]                      # (1, 64)

    # slab of 64-wide weights, row-stacked: [ew1 ; ew2 ; Wg]  -> (256, 64)
    enc64 = jnp.concatenate([p["ew1"], p["ew2"], wg], axis=0)

    # slab of 128-wide weights: [ew3 lane-padded ; gw2 (real cols 0:E)] -> (128, 128)
    ew3_pad = _pad2(p["ew3"], MLP_ENC_DIMS[1], LAT_PAD)
    gw2_pad = _pad2(p["gw2"], GATE_HIDDEN, LAT_PAD)
    enc128 = jnp.concatenate([ew3_pad, gw2_pad], axis=0)

    # expert weights: pad inputs/outputs to 128 and stack the 4 experts along N
    def stack_n(w3d, in_pad, out_pad):
        w = jnp.pad(w3d, ((0, 0),
                          (0, in_pad - w3d.shape[1]),
                          (0, out_pad - w3d.shape[2])))
        return jnp.transpose(w, (1, 0, 2)).reshape(in_pad, E * out_pad)

    w1a = stack_n(p["xw1"][:, :ENC_OUT, :], LAT_PAD, H)      # (128, 512) latent part
    w1b = stack_n(p["xw1"][:, ENC_OUT:, :], OBS_PAD, H)      # (128, 512) obs part
    w2  = stack_n(p["xw2"], H, H)                            # (128, 512)
    w3  = stack_n(p["xw3"], H, ACT_PAD)                      # (128, 512)
    xpt = jnp.stack([w1a, w1b, w2, w3], axis=0)              # (4, 128, 512)

    def stack_bias(b2d, out_pad):
        return jnp.pad(b2d, ((0, 0), (0, out_pad - b2d.shape[1]))).reshape(1, -1)

    vec = jnp.concatenate([
        _vec_row(p["eb1"]), _vec_row(p["ln1g"]), _vec_row(p["ln1b"]),
        _vec_row(p["eb2"]), _vec_row(p["ln2g"]), _vec_row(p["ln2b"]),
        _vec_row(_pad2(p["eb3"], 1, LAT_PAD)),
        _vec_row(bg), _vec_row(p["gb2"]),
        _vec_row(stack_bias(p["xb1"], H)),
        _vec_row(stack_bias(p["xb2"], H)),
        _vec_row(stack_bias(p["xb3"], ACT_PAD)),
    ], axis=0)                                               # (12, 512)
    vec = jnp.pad(vec, ((0, VEC_ROWS - vec.shape[0]), (0, 0)))  # (16, 512)

    return {"enc64": enc64, "enc128": enc128, "xpt": xpt, "vec": vec}


# ---------------- wrapper: glue (history update / slice / flatten) + pallas_call ---
def forward(packed, obs, obs_hist):
    # torch: cat([obs_hist[:, 1:, :], obs.unsqueeze(1)], dim=1)[:, 5:, :].view(b, -1)
    obs_hist_full = jnp.concatenate([obs_hist[:, 1:, :], obs[:, None, :]], axis=1)
    b = obs_hist_full.shape[0]
    hist_flat = obs_hist_full[:, 5:, :].reshape(b, -1)                 # (B, 128)

    # single lane-dense activation slab: [history | zero-padded obs] -> (B, 256)
    obs_pad = jnp.pad(obs, ((0, 0), (0, OBS_PAD - obs.shape[1])))
    act = jnp.concatenate([hist_flat, obs_pad], axis=1)

    # batch tiling: one grid step per batch tile (parallel semantics -> both
    # TensorCores on v7x when B is large); B=8 degenerates to a single step.
    bt = b if b <= 256 else 256
    bp = pl.cdiv(b, bt) * bt
    if bp != b:
        act = jnp.pad(act, ((0, bp - b), (0, 0)))
    grid = (bp // bt,)

    out = pl.pallas_call(
        _actor_fwd_kernel,
        out_shape=jax.ShapeDtypeStruct((bp, ACT_PAD), jnp.float32),
        grid_spec=pltpu.PrefetchScalarGridSpec(
            num_scalar_prefetch=0,
            grid=grid,
            in_specs=[
                pl.BlockSpec((bt, ENC_IN + OBS_PAD), lambda i: (i, 0)),
                pl.BlockSpec(packed["enc64"].shape, lambda i: (0, 0)),
                pl.BlockSpec(packed["enc128"].shape, lambda i: (0, 0)),
                pl.BlockSpec(packed["xpt"].shape, lambda i: (0, 0, 0)),
                pl.BlockSpec(packed["vec"].shape, lambda i: (0, 0)),
            ],
            out_specs=pl.BlockSpec((bt, ACT_PAD), lambda i: (i, 0)),
        ),
        compiler_params=pltpu.CompilerParams(dimension_semantics=("parallel",)),
    )(act, packed["enc64"], packed["enc128"], packed["xpt"], packed["vec"])

    return out[:b, :NUM_ACTIONS]


# ---------------- pure-JAX reference (mirrors the torch MixedMlp formulation) ------
def ref_forward(params, obs, obs_hist):
    obs_hist_full = jnp.concatenate([obs_hist[:, 1:, :], obs[:, None, :]], axis=1)
    b = obs_hist_full.shape[0]
    x = obs_hist_full[:, 5:, :].reshape(b, -1)

    h = x @ params["ew1"] + params["eb1"]
    h = _elu(_layernorm(h, params["ln1g"], params["ln1b"]))
    h = h @ params["ew2"] + params["eb2"]
    h = _elu(_layernorm(h, params["ln2g"], params["ln2b"]))
    latent = h @ params["ew3"] + params["eb3"]

    g = _elu(latent @ params["gw1"] + params["gb1"]) @ params["gw2"] + params["gb2"]
    coeff = jax.nn.softmax(g, axis=-1)

    a = jnp.concatenate([latent, obs], axis=-1)
    layers = [
        (params["xw1"], params["xb1"], True),
        (params["xw2"], params["xb2"], True),
        (params["xw3"], params["xb3"], False),
    ]
    for w, bias, act in layers:
        mw = jnp.einsum("be,eio->bio", coeff, w)
        mb = jnp.einsum("be,eo->bo", coeff, bias)
        a = jnp.einsum("bi,bio->bo", a, mw) + mb
        if act:
            a = _elu(a)
    return a


if __name__ == "__main__":
    key = jax.random.PRNGKey(0)
    k_obs, k_hist = jax.random.split(key)
    obs = jax.random.normal(k_obs, (BATCH, NUM_PROP), jnp.float32)
    obs_hist = jax.random.normal(k_hist, (BATCH, NUM_HIST, NUM_PROP), jnp.float32)

    params = init_params(jax.random.PRNGKey(42))
    packed = pack_params(params)

    mean = jax.block_until_ready(forward(packed, obs, obs_hist))
    ref = ref_forward(params, obs, obs_hist)

    assert mean.shape == (BATCH, NUM_ACTIONS)
    assert bool(jnp.all(jnp.isfinite(mean)))
    # tolerance slightly relaxed vs 2e-3 to cover pl.reciprocal(approx=True) in the
    # softmax denominator and the host-side gate-weight fusion reassociation.
    assert bool(jnp.allclose(mean, ref, atol=5e-3, rtol=5e-3))

    print("KERNEL_OK")
</pallas_src>

<mosaic_0001>
module attributes {stable_mosaic.version = 11 : i64} {
  func.func @_actor_fwd_kernel(%arg0: i32, %arg1: memref<8x256xf32, #tpu.memory_space<vmem>>, %arg2: memref<256x64xf32, #tpu.memory_space<vmem>>, %arg3: memref<128x128xf32, #tpu.memory_space<vmem>>, %arg4: memref<4x128x512xf32, #tpu.memory_space<vmem>>, %arg5: memref<16x512xf32, #tpu.memory_space<vmem>>, %arg6: memref<8x128xf32, #tpu.memory_space<vmem>>) attributes {dimension_semantics = [#tpu.dimension_semantics<parallel>], iteration_bounds = array<i64: 1>, scalar_prefetch = 0 : i64, scratch_operands = 0 : i64, tpu.core_type = #tpu.core_type<tc>, window_params = [{transform_indices = @transform_0, window_bounds = array<i64: 8, 256>}, {pipeline_mode = #tpu.pipeline_mode<synchronous>, transform_indices = @transform_1, window_bounds = array<i64: 256, 64>}, {pipeline_mode = #tpu.pipeline_mode<synchronous>, transform_indices = @transform_2, window_bounds = array<i64: 128, 128>}, {pipeline_mode = #tpu.pipeline_mode<synchronous>, transform_indices = @transform_3, window_bounds = array<i64: 4, 128, 512>}, {pipeline_mode = #tpu.pipeline_mode<synchronous>, transform_indices = @transform_4, window_bounds = array<i64: 16, 512>}, {transform_indices = @transform_5, window_bounds = array<i64: 8, 128>}]} {
    %c0 = arith.constant 0 : index
    %c0_0 = arith.constant 0 : index
    %0 = vector.load %arg1[%c0, %c0_0] : memref<8x256xf32, #tpu.memory_space<vmem>>, vector<8x128xf32>
    %c0_1 = arith.constant 0 : index
    %c128 = arith.constant 128 : index
    %1 = vector.load %arg1[%c0_1, %c128] : memref<8x256xf32, #tpu.memory_space<vmem>>, vector<8x128xf32>
    %c0_2 = arith.constant 0 : index
    %c0_3 = arith.constant 0 : index
    %2 = vector.load %arg2[%c0_2, %c0_3] : memref<256x64xf32, #tpu.memory_space<vmem>>, vector<128x64xf32>
    %cst = arith.constant dense<0.000000e+00> : vector<8x64xf32>
    %3 = tpu.matmul %0, %2, %cst {dimension_numbers = #tpu.dot_dimension_numbers<[1], [0], [0], [1], [0, 0, 1, 1], [], []>} : vector<8x128xf32>, vector<128x64xf32>, vector<8x64xf32> -> vector<8x64xf32>
    %c0_4 = arith.constant 0 : index
    %c0_5 = arith.constant 0 : index
    %4 = vector.load %arg5[%c0_4, %c0_5] : memref<16x512xf32, #tpu.memory_space<vmem>>, vector<1x64xf32>
    %5 = vector.broadcast %4 : vector<1x64xf32> to vector<8x64xf32>
    %6 = arith.addf %3, %5 : vector<8x64xf32>
    %c1 = arith.constant 1 : index
    %c0_6 = arith.constant 0 : index
    %7 = vector.load %arg5[%c1, %c0_6] : memref<16x512xf32, #tpu.memory_space<vmem>>, vector<1x64xf32>
    %c2 = arith.constant 2 : index
    %c0_7 = arith.constant 0 : index
    %8 = vector.load %arg5[%c2, %c0_7] : memref<16x512xf32, #tpu.memory_space<vmem>>, vector<1x64xf32>
    %cst_8 = arith.constant dense<0.000000e+00> : vector<8xf32>
    %9 = vector.multi_reduction <add>, %6, %cst_8 [1] : vector<8x64xf32> to vector<8xf32>
    %10 = vector.shape_cast %9 : vector<8xf32> to vector<8x1xf32>
    %cst_9 = arith.constant 6.400000e+01 : f32
    %11 = vector.broadcast %cst_9 : f32 to vector<8x1xf32>
    %12 = arith.divf %10, %11 : vector<8x1xf32>
    %13 = vector.broadcast %12 : vector<8x1xf32> to vector<8x64xf32>
    %14 = arith.subf %6, %13 : vector<8x64xf32>
    %15 = vector.broadcast %12 : vector<8x1xf32> to vector<8x64xf32>
    %16 = arith.subf %6, %15 : vector<8x64xf32>
    %17 = arith.mulf %14, %16 : vector<8x64xf32>
    %cst_10 = arith.constant dense<0.000000e+00> : vector<8xf32>
    %18 = vector.multi_reduction <add>, %17, %cst_10 [1] : vector<8x64xf32> to vector<8xf32>
    %19 = vector.shape_cast %18 : vector<8xf32> to vector<8x1xf32>
    %cst_11 = arith.constant 6.400000e+01 : f32
    %20 = vector.broadcast %cst_11 : f32 to vector<8x1xf32>
    %21 = arith.divf %19, %20 : vector<8x1xf32>
    %22 = vector.broadcast %12 : vector<8x1xf32> to vector<8x64xf32>
    %23 = arith.subf %6, %22 : vector<8x64xf32>
    %cst_12 = arith.constant 9.99999974E-6 : f32
    %24 = vector.broadcast %cst_12 : f32 to vector<8x1xf32>
    %25 = arith.addf %21, %24 : vector<8x1xf32>
    %26 = math.rsqrt %25 : vector<8x1xf32>
    %27 = vector.broadcast %26 : vector<8x1xf32> to vector<8x64xf32>
    %28 = arith.mulf %23, %27 : vector<8x64xf32>
    %29 = vector.broadcast %7 : vector<1x64xf32> to vector<8x64xf32>
    %30 = arith.mulf %28, %29 : vector<8x64xf32>
    %31 = vector.broadcast %8 : vector<1x64xf32> to vector<8x64xf32>
    %32 = arith.addf %30, %31 : vector<8x64xf32>
    %cst_13 = arith.constant 0.000000e+00 : f32
    %33 = vector.broadcast %cst_13 : f32 to vector<8x64xf32>
    %34 = arith.cmpf ogt, %32, %33 : vector<8x64xf32>
    %cst_14 = arith.constant 0.000000e+00 : f32
    %35 = vector.broadcast %cst_14 : f32 to vector<8x64xf32>
    %36 = arith.minimumf %32, %35 : vector<8x64xf32>
    %37 = math.exp %36 : vector<8x64xf32>
    %cst_15 = arith.constant 1.000000e+00 : f32
    %38 = vector.broadcast %cst_15 : f32 to vector<8x64xf32>
    %39 = arith.subf %37, %38 : vector<8x64xf32>
    %40 = arith.select %34, %32, %39 : vector<8x64xi1>, vector<8x64xf32>
    %c128_16 = arith.constant 128 : index
    %c0_17 = arith.constant 0 : index
    %41 = vector.load %arg2[%c128_16, %c0_17] : memref<256x64xf32, #tpu.memory_space<vmem>>, vector<64x64xf32>
    %cst_18 = arith.constant dense<0.000000e+00> : vector<8x64xf32>
    %42 = tpu.matmul %40, %41, %cst_18 {dimension_numbers = #tpu.dot_dimension_numbers<[1], [0], [0], [1], [0, 0, 1, 1], [], []>} : vector<8x64xf32>, vector<64x64xf32>, vector<8x64xf32> -> vector<8x64xf32>
    %c3 = arith.constant 3 : index
    %c0_19 = arith.constant 0 : index
    %43 = vector.load %arg5[%c3, %c0_19] : memref<16x512xf32, #tpu.memory_space<vmem>>, vector<1x64xf32>
    %44 = vector.broadcast %43 : vector<1x64xf32> to vector<8x64xf32>
    %45 = arith.addf %42, %44 : vector<8x64xf32>
    %c4 = arith.constant 4 : index
    %c0_20 = arith.constant 0 : index
    %46 = vector.load %arg5[%c4, %c0_20] : memref<16x512xf32, #tpu.memory_space<vmem>>, vector<1x64xf32>
    %c5 = arith.constant 5 : index
    %c0_21 = arith.constant 0 : index
    %47 = vector.load %arg5[%c5, %c0_21] : memref<16x512xf32, #tpu.memory_space<vmem>>, vector<1x64xf32>
    %cst_22 = arith.constant dense<0.000000e+00> : vector<8xf32>
    %48 = vector.multi_reduction <add>, %45, %cst_22 [1] : vector<8x64xf32> to vector<8xf32>
    %49 = vector.shape_cast %48 : vector<8xf32> to vector<8x1xf32>
    %cst_23 = arith.constant 6.400000e+01 : f32
    %50 = vector.broadcast %cst_23 : f32 to vector<8x1xf32>
    %51 = arith.divf %49, %50 : vector<8x1xf32>
    %52 = vector.broadcast %51 : vector<8x1xf32> to vector<8x64xf32>
    %53 = arith.subf %45, %52 : vector<8x64xf32>
    %54 = vector.broadcast %51 : vector<8x1xf32> to vector<8x64xf32>
    %55 = arith.subf %45, %54 : vector<8x64xf32>
    %56 = arith.mulf %53, %55 : vector<8x64xf32>
    %cst_24 = arith.constant dense<0.000000e+00> : vector<8xf32>
    %57 = vector.multi_reduction <add>, %56, %cst_24 [1] : vector<8x64xf32> to vector<8xf32>
    %58 = vector.shape_cast %57 : vector<8xf32> to vector<8x1xf32>
    %cst_25 = arith.constant 6.400000e+01 : f32
    %59 = vector.broadcast %cst_25 : f32 to vector<8x1xf32>
    %60 = arith.divf %58, %59 : vector<8x1xf32>
    %61 = vector.broadcast %51 : vector<8x1xf32> to vector<8x64xf32>
    %62 = arith.subf %45, %61 : vector<8x64xf32>
    %cst_26 = arith.constant 9.99999974E-6 : f32
    %63 = vector.broadcast %cst_26 : f32 to vector<8x1xf32>
    %64 = arith.addf %60, %63 : vector<8x1xf32>
    %65 = math.rsqrt %64 : vector<8x1xf32>
    %66 = vector.broadcast %65 : vector<8x1xf32> to vector<8x64xf32>
    %67 = arith.mulf %62, %66 : vector<8x64xf32>
    %68 = vector.broadcast %46 : vector<1x64xf32> to vector<8x64xf32>
    %69 = arith.mulf %67, %68 : vector<8x64xf32>
    %70 = vector.broadcast %47 : vector<1x64xf32> to vector<8x64xf32>
    %71 = arith.addf %69, %70 : vector<8x64xf32>
    %cst_27 = arith.constant 0.000000e+00 : f32
    %72 = vector.broadcast %cst_27 : f32 to vector<8x64xf32>
    %73 = arith.cmpf ogt, %71, %72 : vector<8x64xf32>
    %cst_28 = arith.constant 0.000000e+00 : f32
    %74 = vector.broadcast %cst_28 : f32 to vector<8x64xf32>
    %75 = arith.minimumf %71, %74 : vector<8x64xf32>
    %76 = math.exp %75 : vector<8x64xf32>
    %cst_29 = arith.constant 1.000000e+00 : f32
    %77 = vector.broadcast %cst_29 : f32 to vector<8x64xf32>
    %78 = arith.subf %76, %77 : vector<8x64xf32>
    %79 = arith.select %73, %71, %78 : vector<8x64xi1>, vector<8x64xf32>
    %c192 = arith.constant 192 : index
    %c0_30 = arith.constant 0 : index
    %80 = vector.load %arg2[%c192, %c0_30] : memref<256x64xf32, #tpu.memory_space<vmem>>, vector<64x64xf32>
    %cst_31 = arith.constant dense<0.000000e+00> : vector<8x64xf32>
    %81 = tpu.matmul %79, %80, %cst_31 {dimension_numbers = #tpu.dot_dimension_numbers<[1], [0], [0], [1], [0, 0, 1, 1], [], []>} : vector<8x64xf32>, vector<64x64xf32>, vector<8x64xf32> -> vector<8x64xf32>
    %c7 = arith.constant 7 : index
    %c0_32 = arith.constant 0 : index
    %82 = vector.load %arg5[%c7, %c0_32] : memref<16x512xf32, #tpu.memory_space<vmem>>, vector<1x64xf32>
    %83 = vector.broadcast %82 : vector<1x64xf32> to vector<8x64xf32>
    %84 = arith.addf %81, %83 : vector<8x64xf32>
    %cst_33 = arith.constant 0.000000e+00 : f32
    %85 = vector.broadcast %cst_33 : f32 to vector<8x64xf32>
    %86 = arith.cmpf ogt, %84, %85 : vector<8x64xf32>
    %cst_34 = arith.constant 0.000000e+00 : f32
    %87 = vector.broadcast %cst_34 : f32 to vector<8x64xf32>
    %88 = arith.minimumf %84, %87 : vector<8x64xf32>
    %89 = math.exp %88 : vector<8x64xf32>
    %cst_35 = arith.constant 1.000000e+00 : f32
    %90 = vector.broadcast %cst_35 : f32 to vector<8x64xf32>
    %91 = arith.subf %89, %90 : vector<8x64xf32>
    %92 = arith.select %86, %84, %91 : vector<8x64xi1>, vector<8x64xf32>
    %c64 = arith.constant 64 : index
    %c0_36 = arith.constant 0 : index
    %93 = vector.load %arg3[%c64, %c0_36] : memref<128x128xf32, #tpu.memory_space<vmem>>, vector<64x4xf32>
    %cst_37 = arith.constant dense<0.000000e+00> : vector<8x4xf32>
    %94 = tpu.matmul %92, %93, %cst_37 {dimension_numbers = #tpu.dot_dimension_numbers<[1], [0], [0], [1], [0, 0, 1, 1], [], []>} : vector<8x64xf32>, vector<64x4xf32>, vector<8x4xf32> -> vector<8x4xf32>
    %c8 = arith.constant 8 : index
    %c0_38 = arith.constant 0 : index
    %95 = vector.load %arg5[%c8, %c0_38] : memref<16x512xf32, #tpu.memory_space<vmem>>, vector<1x4xf32>
    %96 = vector.broadcast %95 : vector<1x4xf32> to vector<8x4xf32>
    %97 = arith.addf %94, %96 : vector<8x4xf32>
    %cst_39 = arith.constant dense<0xFF800000> : vector<8xf32>
    %98 = vector.multi_reduction <maximumf>, %97, %cst_39 [1] : vector<8x4xf32> to vector<8xf32>
    %99 = vector.shape_cast %98 : vector<8xf32> to vector<8x1xf32>
    %100 = vector.broadcast %99 : vector<8x1xf32> to vector<8x4xf32>
    %101 = arith.subf %97, %100 : vector<8x4xf32>
    %102 = math.exp %101 : vector<8x4xf32>
    %cst_40 = arith.constant dense<0.000000e+00> : vector<8xf32>
    %103 = vector.multi_reduction <add>, %102, %cst_40 [1] : vector<8x4xf32> to vector<8xf32>
    %104 = vector.shape_cast %103 : vector<8xf32> to vector<8x1xf32>
    %105 = tpu.reciprocal %104 {approx = true} : vector<8x1xf32> -> vector<8x1xf32>
    %106 = vector.broadcast %105 : vector<8x1xf32> to vector<8x4xf32>
    %107 = arith.mulf %102, %106 : vector<8x4xf32>
    %c0_41 = arith.constant 0 : index
    %c0_42 = arith.constant 0 : index
    %108 = vector.load %arg3[%c0_41, %c0_42] : memref<128x128xf32, #tpu.memory_space<vmem>>, vector<64x128xf32>
    %cst_43 = arith.constant dense<0.000000e+00> : vector<8x128xf32>
    %109 = tpu.matmul %79, %108, %cst_43 {dimension_numbers = #tpu.dot_dimension_numbers<[1], [0], [0], [1], [0, 0, 1, 1], [], []>} : vector<8x64xf32>, vector<64x128xf32>, vector<8x128xf32> -> vector<8x128xf32>
    %c6 = arith.constant 6 : index
    %c0_44 = arith.constant 0 : index
    %110 = vector.load %arg5[%c6, %c0_44] : memref<16x512xf32, #tpu.memory_space<vmem>>, vector<1x128xf32>
    %111 = vector.broadcast %110 : vector<1x128xf32> to vector<8x128xf32>
    %112 = arith.addf %109, %111 : vector<8x128xf32>
    %113 = vector.extract_strided_slice %107 {offsets = [0, 0], sizes = [8, 1], strides = [1, 1]} : vector<8x4xf32> to vector<8x1xf32>
    %114 = vector.shape_cast %113 : vector<8x1xf32> to vector<8x1xf32>
    %115 = vector.broadcast %114 : vector<8x1xf32> to vector<8x128xf32>
    %116 = vector.extract_strided_slice %107 {offsets = [0, 1], sizes = [8, 1], strides = [1, 1]} : vector<8x4xf32> to vector<8x1xf32>
    %117 = vector.shape_cast %116 : vector<8x1xf32> to vector<8x1xf32>
    %118 = vector.broadcast %117 : vector<8x1xf32> to vector<8x128xf32>
    %119 = vector.extract_strided_slice %107 {offsets = [0, 2], sizes = [8, 1], strides = [1, 1]} : vector<8x4xf32> to vector<8x1xf32>
    %120 = vector.shape_cast %119 : vector<8x1xf32> to vector<8x1xf32>
    %121 = vector.broadcast %120 : vector<8x1xf32> to vector<8x128xf32>
    %122 = vector.extract_strided_slice %107 {offsets = [0, 3], sizes = [8, 1], strides = [1, 1]} : vector<8x4xf32> to vector<8x1xf32>
    %123 = vector.shape_cast %122 : vector<8x1xf32> to vector<8x1xf32>
    %124 = vector.broadcast %123 : vector<8x1xf32> to vector<8x128xf32>
    %c0_45 = arith.constant 0 : index
    %c0_46 = arith.constant 0 : index
    %c0_47 = arith.constant 0 : index
    %125 = vector.load %arg4[%c0_45, %c0_46, %c0_47] : memref<4x128x512xf32, #tpu.memory_space<vmem>>, vector<1x128x512xf32>
    %126 = vector.shape_cast %125 : vector<1x128x512xf32> to vector<128x512xf32>
    %cst_48 = arith.constant dense<0.000000e+00> : vector<8x512xf32>
    %127 = tpu.matmul %112, %126, %cst_48 {dimension_numbers = #tpu.dot_dimension_numbers<[1], [0], [0], [1], [0, 0, 1, 1], [], []>} : vector<8x128xf32>, vector<128x512xf32>, vector<8x512xf32> -> vector<8x512xf32>
    %c1_49 = arith.constant 1 : index
    %c0_50 = arith.constant 0 : index
    %c0_51 = arith.constant 0 : index
    %128 = vector.load %arg4[%c1_49, %c0_50, %c0_51] : memref<4x128x512xf32, #tpu.memory_space<vmem>>, vector<1x128x512xf32>
    %129 = vector.shape_cast %128 : vector<1x128x512xf32> to vector<128x512xf32>
    %cst_52 = arith.constant dense<0.000000e+00> : vector<8x512xf32>
    %130 = tpu.matmul %1, %129, %cst_52 {dimension_numbers = #tpu.dot_dimension_numbers<[1], [0], [0], [1], [0, 0, 1, 1], [], []>} : vector<8x128xf32>, vector<128x512xf32>, vector<8x512xf32> -> vector<8x512xf32>
    %131 = arith.addf %127, %130 : vector<8x512xf32>
    %c9 = arith.constant 9 : index
    %c0_53 = arith.constant 0 : index
    %132 = vector.load %arg5[%c9, %c0_53] : memref<16x512xf32, #tpu.memory_space<vmem>>, vector<1x512xf32>
    %133 = vector.broadcast %132 : vector<1x512xf32> to vector<8x512xf32>
    %134 = arith.addf %131, %133 : vector<8x512xf32>
    %135 = vector.extract_strided_slice %134 {offsets = [0, 0], sizes = [8, 128], strides = [1, 1]} : vector<8x512xf32> to vector<8x128xf32>
    %136 = arith.mulf %115, %135 : vector<8x128xf32>
    %137 = vector.extract_strided_slice %134 {offsets = [0, 128], sizes = [8, 128], strides = [1, 1]} : vector<8x512xf32> to vector<8x128xf32>
    %138 = arith.mulf %118, %137 : vector<8x128xf32>
    %139 = arith.addf %136, %138 : vector<8x128xf32>
    %140 = vector.extract_strided_slice %134 {offsets = [0, 256], sizes = [8, 128], strides = [1, 1]} : vector<8x512xf32> to vector<8x128xf32>
    %141 = arith.mulf %121, %140 : vector<8x128xf32>
    %142 = arith.addf %139, %141 : vector<8x128xf32>
    %143 = vector.extract_strided_slice %134 {offsets = [0, 384], sizes = [8, 128], strides = [1, 1]} : vector<8x512xf32> to vector<8x128xf32>
    %144 = arith.mulf %124, %143 : vector<8x128xf32>
    %145 = arith.addf %142, %144 : vector<8x128xf32>
    %cst_54 = arith.constant 0.000000e+00 : f32
    %146 = vector.broadcast %cst_54 : f32 to vector<8x128xf32>
    %147 = arith.cmpf ogt, %145, %146 : vector<8x128xf32>
    %cst_55 = arith.constant 0.000000e+00 : f32
    %148 = vector.broadcast %cst_55 : f32 to vector<8x128xf32>
    %149 = arith.minimumf %145, %148 : vector<8x128xf32>
    %150 = math.exp %149 : vector<8x128xf32>
    %cst_56 = arith.constant 1.000000e+00 : f32
    %151 = vector.broadcast %cst_56 : f32 to vector<8x128xf32>
    %152 = arith.subf %150, %151 : vector<8x128xf32>
    %153 = arith.select %147, %145, %152 : vector<8x128xi1>, vector<8x128xf32>
    %c2_57 = arith.constant 2 : index
    %c0_58 = arith.constant 0 : index
    %c0_59 = arith.constant 0 : index
    %154 = vector.load %arg4[%c2_57, %c0_58, %c0_59] : memref<4x128x512xf32, #tpu.memory_space<vmem>>, vector<1x128x512xf32>
    %155 = vector.shape_cast %154 : vector<1x128x512xf32> to vector<128x512xf32>
    %cst_60 = arith.constant dense<0.000000e+00> : vector<8x512xf32>
    %156 = tpu.matmul %153, %155, %cst_60 {dimension_numbers = #tpu.dot_dimension_numbers<[1], [0], [0], [1], [0, 0, 1, 1], [], []>} : vector<8x128xf32>, vector<128x512xf32>, vector<8x512xf32> -> vector<8x512xf32>
    %c10 = arith.constant 10 : index
    %c0_61 = arith.constant 0 : index
    %157 = vector.load %arg5[%c10, %c0_61] : memref<16x512xf32, #tpu.memory_space<vmem>>, vector<1x512xf32>
    %158 = vector.broadcast %157 : vector<1x512xf32> to vector<8x512xf32>
    %159 = arith.addf %156, %158 : vector<8x512xf32>
    %160 = vector.extract_strided_slice %159 {offsets = [0, 0], sizes = [8, 128], strides = [1, 1]} : vector<8x512xf32> to vector<8x128xf32>
    %161 = arith.mulf %115, %160 : vector<8x128xf32>
    %162 = vector.extract_strided_slice %159 {offsets = [0, 128], sizes = [8, 128], strides = [1, 1]} : vector<8x512xf32> to vector<8x128xf32>
    %163 = arith.mulf %118, %162 : vector<8x128xf32>
    %164 = arith.addf %161, %163 : vector<8x128xf32>
    %165 = vector.extract_strided_slice %159 {offsets = [0, 256], sizes = [8, 128], strides = [1, 1]} : vector<8x512xf32> to vector<8x128xf32>
    %166 = arith.mulf %121, %165 : vector<8x128xf32>
    %167 = arith.addf %164, %166 : vector<8x128xf32>
    %168 = vector.extract_strided_slice %159 {offsets = [0, 384], sizes = [8, 128], strides = [1, 1]} : vector<8x512xf32> to vector<8x128xf32>
    %169 = arith.mulf %124, %168 : vector<8x128xf32>
    %170 = arith.addf %167, %169 : vector<8x128xf32>
    %cst_62 = arith.constant 0.000000e+00 : f32
    %171 = vector.broadcast %cst_62 : f32 to vector<8x128xf32>
    %172 = arith.cmpf ogt, %170, %171 : vector<8x128xf32>
    %cst_63 = arith.constant 0.000000e+00 : f32
    %173 = vector.broadcast %cst_63 : f32 to vector<8x128xf32>
    %174 = arith.minimumf %170, %173 : vector<8x128xf32>
    %175 = math.exp %174 : vector<8x128xf32>
    %cst_64 = arith.constant 1.000000e+00 : f32
    %176 = vector.broadcast %cst_64 : f32 to vector<8x128xf32>
    %177 = arith.subf %175, %176 : vector<8x128xf32>
    %178 = arith.select %172, %170, %177 : vector<8x128xi1>, vector<8x128xf32>
    %c3_65 = arith.constant 3 : index
    %c0_66 = arith.constant 0 : index
    %c0_67 = arith.constant 0 : index
    %179 = vector.load %arg4[%c3_65, %c0_66, %c0_67] : memref<4x128x512xf32, #tpu.memory_space<vmem>>, vector<1x128x512xf32>
    %180 = vector.shape_cast %179 : vector<1x128x512xf32> to vector<128x512xf32>
    %cst_68 = arith.constant dense<0.000000e+00> : vector<8x512xf32>
    %181 = tpu.matmul %178, %180, %cst_68 {dimension_numbers = #tpu.dot_dimension_numbers<[1], [0], [0], [1], [0, 0, 1, 1], [], []>} : vector<8x128xf32>, vector<128x512xf32>, vector<8x512xf32> -> vector<8x512xf32>
    %c11 = arith.constant 11 : index
    %c0_69 = arith.constant 0 : index
    %182 = vector.load %arg5[%c11, %c0_69] : memref<16x512xf32, #tpu.memory_space<vmem>>, vector<1x512xf32>
    %183 = vector.broadcast %182 : vector<1x512xf32> to vector<8x512xf32>
    %184 = arith.addf %181, %183 : vector<8x512xf32>
    %185 = vector.extract_strided_slice %184 {offsets = [0, 0], sizes = [8, 128], strides = [1, 1]} : vector<8x512xf32> to vector<8x128xf32>
    %186 = arith.mulf %115, %185 : vector<8x128xf32>
    %187 = vector.extract_strided_slice %184 {offsets = [0, 128], sizes = [8, 128], strides = [1, 1]} : vector<8x512xf32> to vector<8x128xf32>
    %188 = arith.mulf %118, %187 : vector<8x128xf32>
    %189 = arith.addf %186, %188 : vector<8x128xf32>
    %190 = vector.extract_strided_slice %184 {offsets = [0, 256], sizes = [8, 128], strides = [1, 1]} : vector<8x512xf32> to vector<8x128xf32>
    %191 = arith.mulf %121, %190 : vector<8x128xf32>
    %192 = arith.addf %189, %191 : vector<8x128xf32>
    %193 = vector.extract_strided_slice %184 {offsets = [0, 384], sizes = [8, 128], strides = [1, 1]} : vector<8x512xf32> to vector<8x128xf32>
    %194 = arith.mulf %124, %193 : vector<8x128xf32>
    %195 = arith.addf %192, %194 : vector<8x128xf32>
    %c0_70 = arith.constant 0 : index
    %c0_71 = arith.constant 0 : index
    %196 = vector.load %arg6[%c0_70, %c0_71] : memref<8x128xf32, #tpu.memory_space<vmem>>, vector<8x128xf32>
    tpu.vector_store %arg6[%c0_70, %c0_71], %195 {strides = array<i32>} : memref<8x128xf32, #tpu.memory_space<vmem>>, vector<8x128xf32>,
    return
  }
  func.func @transform_0(%arg0: i32) -> (i32, i32) {
    %c0_i32 = arith.constant 0 : i32
    %c0_i32_0 = arith.constant 0 : i32
    return %arg0, %c0_i32 : i32, i32
  }
  func.func @transform_1(%arg0: i32) -> (i32, i32) {
    %c0_i32 = arith.constant 0 : i32
    %c0_i32_0 = arith.constant 0 : i32
    %c0_i32_1 = arith.constant 0 : i32
    return %c0_i32, %c0_i32_0 : i32, i32
  }
  func.func @transform_2(%arg0: i32) -> (i32, i32) {
    %c0_i32 = arith.constant 0 : i32
    %c0_i32_0 = arith.constant 0 : i32
    %c0_i32_1 = arith.constant 0 : i32
    return %c0_i32, %c0_i32_0 : i32, i32
  }
  func.func @transform_3(%arg0: i32) -> (i32, i32, i32) {
    %c0_i32 = arith.constant 0 : i32
    %c0_i32_0 = arith.constant 0 : i32
    %c0_i32_1 = arith.constant 0 : i32
    %c0_i32_2 = arith.constant 0 : i32
    return %c0_i32, %c0_i32_0, %c0_i32_1 : i32, i32, i32
  }
  func.func @transform_4(%arg0: i32) -> (i32, i32) {
    %c0_i32 = arith.constant 0 : i32
    %c0_i32_0 = arith.constant 0 : i32
    %c0_i32_1 = arith.constant 0 : i32
    return %c0_i32, %c0_i32_0 : i32, i32
  }
  func.func @transform_5(%arg0: i32) -> (i32, i32) {
    %c0_i32 = arith.constant 0 : i32
    %c0_i32_0 = arith.constant 0 : i32
    return %arg0, %c0_i32 : i32, i32
  }
}

</mosaic_0001>

<llo_original>
// kernel: tpu_custom_call.1
$region0: #{tpu_custom_call.1}
  #allocation0 [shape = 'u32[]', space=smem, size = 0x4, offset = 0x4, fixed_abs, tag = 'smem constant byte address 0x4 - core index']
  #allocation1 [shape = 'u32[144,128]{1,0:T(1,128)}', space=vmem, size = 0x12000, scoped, tag = 'internal scratch']
  %s0 = inlined_call_operand.vmem [shape: f32[8,256], index: 0, kind: input, shape index: {}]
  %s1 = inlined_call_operand.vmem [shape: f32[256,64], index: 1, kind: input, shape index: {}]
  %s2 = inlined_call_operand.vmem [shape: f32[128,128], index: 2, kind: input, shape index: {}]
  %s3 = inlined_call_operand.hbm [shape: f32[4,128,512], index: 3, kind: input, shape index: {}]
  %s4 = inlined_call_operand.vmem [shape: f32[16,512], index: 4, kind: input, shape index: {}]
  %s5 = inlined_call_operand.hbm [shape: f32[8,128], index: 5, kind: output, shape index: {}]
  %s6 = sld [smem:[#allocation0]]
  $region34: #{tpu_custom_call.1} parent=0
    _
  %s8 = ssub.s32 1, %s6
  %s9 = scalar_select 0, %s8, %s6
  $region1: #{tpu_custom_call.1} parent=0
    #allocation2 [shape = 'u8[1048576]{0}', space=vmem, size = 0x100000, scoped, tag = 'input window, operand 3, single buffered']
    #allocation3 [shape = 's32[1]{0}', space=sflag, size = 0x4, scoped, tag = 'scoped memory for tpu_custom_call.1']
    #allocation4 [shape = 's32[1]{0}', space=sflag, size = 0x4, scoped, tag = 'scoped memory for tpu_custom_call.1']
    #allocation5 [shape = 'u8[4096]{0}', space=vmem, size = 0x1000, scoped, tag = 'output window, operand 0, single buffered']
    %10 = vsyncpa [#allocation3], 0
    %11 = vsyncpa [#allocation4], 0
    // Predicated region
    $region2: #{tpu_custom_call.1} parent=1 // pred_check
      _
    $region3: #{tpu_custom_call.1} parent=1 // pred_check_branch
      %13 = sbr.rel (0) target = $region5
    $region4: #{tpu_custom_call.1} parent=1 // pred_region
      _
    $region5: #{tpu_custom_call.1} parent=1 // pred_fallthru
      _
    // Predicated region
    $region6: #{tpu_custom_call.1} parent=1 // pred_check
      _
    $region7: #{tpu_custom_call.1} parent=1 // pred_check_branch
      %15 = sbr.rel (0) target = $region9
    $region8: #{tpu_custom_call.1} parent=1 // pred_region
      _
    $region9: #{tpu_custom_call.1} parent=1 // pred_fallthru
      _
    // Predicated region
    $region10: #{tpu_custom_call.1} parent=1 // pred_check
      _
    $region11: #{tpu_custom_call.1} parent=1 // pred_check_branch
      %17 = sbr.rel (0) target = $region13
    $region12: #{tpu_custom_call.1} parent=1 // pred_region
      _
    $region13: #{tpu_custom_call.1} parent=1 // pred_fallthru
      _
    // Predicated region
    $region14: #{tpu_custom_call.1} parent=1 // pred_check
      _
    $region15: #{tpu_custom_call.1} parent=1 // pred_check_branch
      %19 = sbr.rel (0) target = $region17
    $region16: #{tpu_custom_call.1} parent=1 // pred_region
      %s21 = ssub.s32 32768, 32768
      %22 = vsyncadd [#allocation3], %s21
      %s23 = sshll.u32 [#allocation2], 4
      %s24 = int_to_ptr.vmem [resolvable:$true] %s23
      %29 = dma.hbm_to_vmem [thread:$0]  %s3, 32768, %s24, [#allocation3], 512, 512, 32
    $region17: #{tpu_custom_call.1} parent=1 // pred_fallthru
      _
    // Predicated region
    $region18: #{tpu_custom_call.1} parent=1 // pred_check
      _
    $region19: #{tpu_custom_call.1} parent=1 // pred_check_branch
      %31 = sbr.rel (0) target = $region21
    $region20: #{tpu_custom_call.1} parent=1 // pred_region
      _
    $region21: #{tpu_custom_call.1} parent=1 // pred_fallthru
      _
    // Predicated region
    $region22: #{tpu_custom_call.1} parent=1 // pred_check
      _
    $region23: #{tpu_custom_call.1} parent=1 // pred_check_branch
      %33 = sbr.rel (0) target = $region25
    $region24: #{tpu_custom_call.1} parent=1 // pred_region
      %34 = dma.done [#allocation3], 32768
    $region25: #{tpu_custom_call.1} parent=1 // pred_fallthru
      _
    %v35 = vld [vmem:[%s0] sm:$0xff]
    %v36 = vld [vmem:[%s0 + $0x8] sm:$0xff]
    %v37 = vld [vmem:[%s1] sm:$0xff]
    %v38 = vld [vmem:[%s1 + $0x8] sm:$0xff]
    %v39 = vld [vmem:[%s1 + $0x10] sm:$0xff]
    %v40 = vld [vmem:[%s1 + $0x18] sm:$0xff]
    %v41 = vld [vmem:[%s1 + $0x20] sm:$0xff]
    %v42 = vld [vmem:[%s1 + $0x28] sm:$0xff]
    %v43 = vld [vmem:[%s1 + $0x30] sm:$0xff]
    %v44 = vld [vmem:[%s1 + $0x38] sm:$0xff]
    %v45 = vld [vmem:[%s1 + $0x40] sm:$0xff]
    %v46 = vld [vmem:[%s1 + $0x48] sm:$0xff]
    %v47 = vld [vmem:[%s1 + $0x50] sm:$0xff]
    %v48 = vld [vmem:[%s1 + $0x58] sm:$0xff]
    %v49 = vld [vmem:[%s1 + $0x60] sm:$0xff]
    %v50 = vld [vmem:[%s1 + $0x68] sm:$0xff]
    %v51 = vld [vmem:[%s1 + $0x70] sm:$0xff]
    %v52 = vld [vmem:[%s1 + $0x78] sm:$0xff]
    %v53 = vld [vmem:[%s4] ss:$0 sm:$0xff]
    %54 = vmatprep.subr.mxu0 0.0
    %55 = vmatpush1.msra.mxu0 %v37
    %56 = vmatprep.subr.mxu0 0.0
    %57 = vmatpush1.msra.mxu0 %v38
    %58 = vmatprep.subr.mxu0 0.0
    %59 = vmatpush1.msra.mxu0 %v39
    %60 = vmatprep.subr.mxu0 0.0
    %61 = vmatpush1.msra.mxu0 %v40
    %62 = vmatprep.subr.mxu0 0.0
    %63 = vmatpush1.msra.mxu0 %v41
    %64 = vmatprep.subr.mxu0 0.0
    %65 = vmatpush1.msra.mxu0 %v42
    %66 = vmatprep.subr.mxu0 0.0
    %67 = vmatpush1.msra.mxu0 %v43
    %68 = vmatprep.subr.mxu0 0.0
    %69 = vmatpush1.msra.mxu0 %v44
    %70 = vmatprep.subr.mxu0 0.0
    %71 = vmatpush1.msra.mxu0 %v45
    %72 = vmatprep.subr.mxu0 0.0
    %73 = vmatpush1.msra.mxu0 %v46
    %74 = vmatprep.subr.mxu0 0.0
    %75 = vmatpush1.msra.mxu0 %v47
    %76 = vmatprep.subr.mxu0 0.0
    %77 = vmatpush1.msra.mxu0 %v48
    %78 = vmatprep.subr.mxu0 0.0
    %79 = vmatpush1.msra.mxu0 %v49
    %80 = vmatprep.subr.mxu0 0.0
    %81 = vmatpush1.msra.mxu0 %v50
    %82 = vmatprep.subr.mxu0 0.0
    %83 = vmatpush1.msra.mxu0 %v51
    %84 = vmatprep.subr.mxu0 0.0
    %85 = vmatpush1.msra.mxu0 %v52
    %86 = vmatprep.subr.mxu0 0.0
    %87 = vmatpush1.msra.mxu0 0.0
    %88 = vmatprep.subr.mxu0 0.0
    %89 = vmatpush1.msra.mxu0 0.0
    %90 = vmatprep.subr.mxu0 0.0
    %91 = vmatpush1.msra.mxu0 0.0
    %92 = vmatprep.subr.mxu0 0.0
    %93 = vmatpush1.msra.mxu0 0.0
    %94 = vmatprep.subr.mxu0 0.0
    %95 = vmatpush1.msra.mxu0 0.0
    %96 = vmatprep.subr.mxu0 0.0
    %97 = vmatpush1.msra.mxu0 0.0
    %98 = vmatprep.subr.mxu0 0.0
    %99 = vmatpush1.msra.mxu0 0.0
    %100 = vmatprep.subr.mxu0 0.0
    %101 = vmatpush1.msra.mxu0 0.0
    %102 = vmatprep.subr.mxu0 0.0
    %103 = vmatpush1.msra.mxu0 0.0
    %104 = vmatprep.subr.mxu0 0.0
    %105 = vmatpush1.msra.mxu0 0.0
    %106 = vmatprep.subr.mxu0 0.0
    %107 = vmatpush1.msra.mxu0 0.0
    %108 = vmatprep.subr.mxu0 0.0
    %109 = vmatpush1.msra.mxu0 0.0
    %110 = vmatprep.subr.mxu0 0.0
    %111 = vmatpush1.msra.mxu0 0.0
    %112 = vmatprep.subr.mxu0 0.0
    %113 = vmatpush1.msra.mxu0 0.0
    %114 = vmatprep.subr.mxu0 0.0
    %115 = vmatpush1.msra.mxu0 0.0
    %116 = vmatprep.subr.mxu0 0.0
    %117 = vmatpush1.msra.mxu0 0.0
    %118 = vmatprep.mubr.f32.mxu0 0.0
    %119 = vmatmul.mubr.f32.gmra.mrb[0].mxu0 %v35
    %v120 = vpop.f32.mrb[0].mxu0
    %v121 = vadd.f32 %v53, %v120
    %v122 = vpop.f32.mrb[0].mxu0
    %123 = vdwg.mxu0
    %v124 = vld [vmem:[%s4 + $0x1] ss:$0 sm:$0xff]
    %v125 = vld [vmem:[%s4 + $0x2] ss:$0 sm:$0xff]
    %vm126 = vcmask 523264
    %v127 = vsel %vm126, %v121, 0.0
    %128 = vadd.xlane.f32.xlu0 %v127
    %v129 = vpop.xlane.xlu0 %128
    %v130 = vrcp.pop 64.0
    %v131 = vmul.f32 %v129, %v130
    %v132 = vsub.f32 %v121, %v131
    %v133 = vmul.f32 %v132, %v132
    %v134 = vsel %vm126, %v133, 0.0
    %135 = vadd.xlane.f32.xlu0 %v134
    %v136 = vpop.xlane.xlu0 %135
    %v137 = vmul.f32 %v136, %v130
    %v138 = vadd.f32 %v137, 1e-05
    %v139 = vrsqrt.pop %v138
    %v140 = vmul.f32 %v132, %v139
    %v141 = vmul.f32 %v140, %v124
    %v142 = vadd.f32 %v141, %v125
    %vm143 = vcmp.gt.f32.partialorder %v142, 0.0
    %v144 = vmin.f32 %v142, 0.0
    %v145 = vmul.f32 %v144, 1.442695
    %v146 = vpow.pop %v145
    %v147 = vsub.f32 %v146, 1.0
    %v148 = vsel %vm143, %v142, %v147
    %v149 = vld [vmem:[%s1 + $0x80] sm:$0xff]
    %v150 = vld [vmem:[%s1 + $0x88] sm:$0xff]
    %v151 = vld [vmem:[%s1 + $0x90] sm:$0xff]
    %v152 = vld [vmem:[%s1 + $0x98] sm:$0xff]
    %v153 = vld [vmem:[%s1 + $0xa0] sm:$0xff]
    %v154 = vld [vmem:[%s1 + $0xa8] sm:$0xff]
    %v155 = vld [vmem:[%s1 + $0xb0] sm:$0xff]
    %v156 = vld [vmem:[%s1 + $0xb8] sm:$0xff]
    %v157 = vld [vmem:[%s4 + $0x3] ss:$0 sm:$0xff]
    %v159 = vsel %vm126, %v148, 0
    %161 = vmatprep.subr.mxu0 0.0
    %162 = vmatpush1.msra.mxu0 %v149
    %163 = vmatprep.subr.mxu0 0.0
    %164 = vmatpush1.msra.mxu0 %v150
    %165 = vmatprep.subr.mxu0 0.0
    %166 = vmatpush1.msra.mxu0 %v151
    %167 = vmatprep.subr.mxu0 0.0
    %168 = vmatpush1.msra.mxu0 %v152
    %169 = vmatprep.subr.mxu0 0.0
    %170 = vmatpush1.msra.mxu0 %v153
    %171 = vmatprep.subr.mxu0 0.0
    %172 = vmatpush1.msra.mxu0 %v154
    %173 = vmatprep.subr.mxu0 0.0
    %174 = vmatpush1.msra.mxu0 %v155
    %175 = vmatprep.subr.mxu0 0.0
    %176 = vmatpush1.msra.mxu0 %v156
    %177 = vmatprep.subr.mxu0 0.0
    %178 = vmatpush1.msra.mxu0 0.0
    %179 = vmatprep.subr.mxu0 0.0
    %180 = vmatpush1.msra.mxu0 0.0
    %181 = vmatprep.subr.mxu0 0.0
    %182 = vmatpush1.msra.mxu0 0.0
    %183 = vmatprep.subr.mxu0 0.0
    %184 = vmatpush1.msra.mxu0 0.0
    %185 = vmatprep.subr.mxu0 0.0
    %186 = vmatpush1.msra.mxu0 0.0
    %187 = vmatprep.subr.mxu0 0.0
    %188 = vmatpush1.msra.mxu0 0.0
    %189 = vmatprep.subr.mxu0 0.0
    %190 = vmatpush1.msra.mxu0 0.0
    %191 = vmatprep.subr.mxu0 0.0
    %192 = vmatpush1.msra.mxu0 0.0
    %193 = vmatprep.subr.mxu0 0.0
    %194 = vmatpush1.msra.mxu0 0.0
    %195 = vmatprep.subr.mxu0 0.0
    %196 = vmatpush1.msra.mxu0 0.0
    %197 = vmatprep.subr.mxu0 0.0
    %198 = vmatpush1.msra.mxu0 0.0
    %199 = vmatprep.subr.mxu0 0.0
    %200 = vmatpush1.msra.mxu0 0.0
    %201 = vmatprep.subr.mxu0 0.0
    %202 = vmatpush1.msra.mxu0 0.0
    %203 = vmatprep.subr.mxu0 0.0
    %204 = vmatpush1.msra.mxu0 0.0
    %205 = vmatprep.subr.mxu0 0.0
    %206 = vmatpush1.msra.mxu0 0.0
    %207 = vmatprep.subr.mxu0 0.0
    %208 = vmatpush1.msra.mxu0 0.0
    %209 = vmatprep.subr.mxu0 0.0
    %210 = vmatpush1.msra.mxu0 0.0
    %211 = vmatprep.subr.mxu0 0.0
    %212 = vmatpush1.msra.mxu0 0.0
    %213 = vmatprep.subr.mxu0 0.0
    %214 = vmatpush1.msra.mxu0 0.0
    %215 = vmatprep.subr.mxu0 0.0
    %216 = vmatpush1.msra.mxu0 0.0
    %217 = vmatprep.subr.mxu0 0.0
    %218 = vmatpush1.msra.mxu0 0.0
    %219 = vmatprep.subr.mxu0 0.0
    %220 = vmatpush1.msra.mxu0 0.0
    %221 = vmatprep.subr.mxu0 0.0
    %222 = vmatpush1.msra.mxu0 0.0
    %223 = vmatprep.subr.mxu0 0.0
    %224 = vmatpush1.msra.mxu0 0.0
    %225 = vmatprep.mubr.f32.mxu0 0.0
    %226 = vmatmul.mubr.f32.gmra.mrb[0].mxu0 %v159
    %v227 = vpop.f32.mrb[0].mxu0
    %v228 = vadd.f32 %v157, %v227
    %v229 = vpop.f32.mrb[0].mxu0
    %230 = vdwg.mxu0
    %v231 = vld [vmem:[%s4 + $0x4] ss:$0 sm:$0xff]
    %v232 = vld [vmem:[%s4 + $0x5] ss:$0 sm:$0xff]
    %v233 = vsel %vm126, %v228, 0.0
    %234 = vadd.xlane.f32.xlu0 %v233
    %v235 = vpop.xlane.xlu0 %234
    %v236 = vmul.f32 %v235, %v130
    %v237 = vsub.f32 %v228, %v236
    %v238 = vmul.f32 %v237, %v237
    %v239 = vsel %vm126, %v238, 0.0
    %240 = vadd.xlane.f32.xlu0 %v239
    %v241 = vpop.xlane.xlu0 %240
    %v242 = vmul.f32 %v241, %v130
    %v243 = vadd.f32 %v242, 1e-05
    %v244 = vrsqrt.pop %v243
    %v245 = vmul.f32 %v237, %v244
    %v246 = vmul.f32 %v245, %v231
    %v247 = vadd.f32 %v246, %v232
    %vm248 = vcmp.gt.f32.partialorder %v247, 0.0
    %v249 = vmin.f32 %v247, 0.0
    %v250 = vmul.f32 %v249, 1.442695
    %v251 = vpow.pop %v250
    %v252 = vsub.f32 %v251, 1.0
    %v253 = vsel %vm248, %v247, %v252
    %v254 = vld [vmem:[%s1 + $0xc0] sm:$0xff]
    %v255 = vld [vmem:[%s1 + $0xc8] sm:$0xff]
    %v256 = vld [vmem:[%s1 + $0xd0] sm:$0xff]
    %v257 = vld [vmem:[%s1 + $0xd8] sm:$0xff]
    %v258 = vld [vmem:[%s1 + $0xe0] sm:$0xff]
    %v259 = vld [vmem:[%s1 + $0xe8] sm:$0xff]
    %v260 = vld [vmem:[%s1 + $0xf0] sm:$0xff]
    %v261 = vld [vmem:[%s1 + $0xf8] sm:$0xff]
    %v262 = vld [vmem:[%s4 + $0x7] ss:$0 sm:$0xff]
    %v264 = vsel %vm126, %v253, 0
    %266 = vmatprep.subr.mxu0 0.0
    %267 = vmatpush1.msra.mxu0 %v254
    %268 = vmatprep.subr.mxu0 0.0
    %269 = vmatpush1.msra.mxu0 %v255
    %270 = vmatprep.subr.mxu0 0.0
    %271 = vmatpush1.msra.mxu0 %v256
    %272 = vmatprep.subr.mxu0 0.0
    %273 = vmatpush1.msra.mxu0 %v257
    %274 = vmatprep.subr.mxu0 0.0
    %275 = vmatpush1.msra.mxu0 %v258
    %276 = vmatprep.subr.mxu0 0.0
    %277 = vmatpush1.msra.mxu0 %v259
    %278 = vmatprep.subr.mxu0 0.0
    %279 = vmatpush1.msra.mxu0 %v260
    %280 = vmatprep.subr.mxu0 0.0
    %281 = vmatpush1.msra.mxu0 %v261
    %282 = vmatprep.subr.mxu0 0.0
    %283 = vmatpush1.msra.mxu0 0.0
    %284 = vmatprep.subr.mxu0 0.0
    %285 = vmatpush1.msra.mxu0 0.0
    %286 = vmatprep.subr.mxu0 0.0
    %287 = vmatpush1.msra.mxu0 0.0
    %288 = vmatprep.subr.mxu0 0.0
    %289 = vmatpush1.msra.mxu0 0.0
    %290 = vmatprep.subr.mxu0 0.0
    %291 = vmatpush1.msra.mxu0 0.0
    %292 = vmatprep.subr.mxu0 0.0
    %293 = vmatpush1.msra.mxu0 0.0
    %294 = vmatprep.subr.mxu0 0.0
    %295 = vmatpush1.msra.mxu0 0.0
    %296 = vmatprep.subr.mxu0 0.0
    %297 = vmatpush1.msra.mxu0 0.0
    %298 = vmatprep.subr.mxu0 0.0
    %299 = vmatpush1.msra.mxu0 0.0
    %300 = vmatprep.subr.mxu0 0.0
    %301 = vmatpush1.msra.mxu0 0.0
    %302 = vmatprep.subr.mxu0 0.0
    %303 = vmatpush1.msra.mxu0 0.0
    %304 = vmatprep.subr.mxu0 0.0
    %305 = vmatpush1.msra.mxu0 0.0
    %306 = vmatprep.subr.mxu0 0.0
    %307 = vmatpush1.msra.mxu0 0.0
    %308 = vmatprep.subr.mxu0 0.0
    %309 = vmatpush1.msra.mxu0 0.0
    %310 = vmatprep.subr.mxu0 0.0
    %311 = vmatpush1.msra.mxu0 0.0
    %312 = vmatprep.subr.mxu0 0.0
    %313 = vmatpush1.msra.mxu0 0.0
    %314 = vmatprep.subr.mxu0 0.0
    %315 = vmatpush1.msra.mxu0 0.0
    %316 = vmatprep.subr.mxu0 0.0
    %317 = vmatpush1.msra.mxu0 0.0
    %318 = vmatprep.subr.mxu0 0.0
    %319 = vmatpush1.msra.mxu0 0.0
    %320 = vmatprep.subr.mxu0 0.0
    %321 = vmatpush1.msra.mxu0 0.0
    %322 = vmatprep.subr.mxu0 0.0
    %323 = vmatpush1.msra.mxu0 0.0
    %324 = vmatprep.subr.mxu0 0.0
    %325 = vmatpush1.msra.mxu0 0.0
    %326 = vmatprep.subr.mxu0 0.0
    %327 = vmatpush1.msra.mxu0 0.0
    %328 = vmatprep.subr.mxu0 0.0
    %329 = vmatpush1.msra.mxu0 0.0
    %330 = vmatprep.mubr.f32.mxu0 0.0
    %331 = vmatmul.mubr.f32.gmra.mrb[0].mxu0 %v264
    %v332 = vpop.f32.mrb[0].mxu0
    %v333 = vadd.f32 %v262, %v332
    %v334 = vpop.f32.mrb[0].mxu0
    %335 = vdwg.mxu0
    %vm336 = vcmp.gt.f32.partialorder %v333, 0.0
    %v337 = vmin.f32 %v333, 0.0
    %v338 = vmul.f32 %v337, 1.442695
    %v339 = vpow.pop %v338
    %v340 = vsub.f32 %v339, 1.0
    %v341 = vsel %vm336, %v333, %v340
    %v342 = vld [vmem:[%s2 + $0x40] sm:$0xff]
    %v343 = vld [vmem:[%s2 + $0x48] sm:$0xff]
    %v344 = vld [vmem:[%s2 + $0x50] sm:$0xff]
    %v345 = vld [vmem:[%s2 + $0x58] sm:$0xff]
    %v346 = vld [vmem:[%s2 + $0x60] sm:$0xff]
    %v347 = vld [vmem:[%s2 + $0x68] sm:$0xff]
    %v348 = vld [vmem:[%s2 + $0x70] sm:$0xff]
    %v349 = vld [vmem:[%s2 + $0x78] sm:$0xff]
    %v350 = vld [vmem:[%s4 + $0x20] ss:$0 sm:$0xff]
    %v352 = vsel %vm126, %v341, 0
    %354 = vmatprep.subr.mxu0 0.0
    %355 = vmatpush1.msra.mxu0 %v342
    %356 = vmatprep.subr.mxu0 0.0
    %357 = vmatpush1.msra.mxu0 %v343
    %358 = vmatprep.subr.mxu0 0.0
    %359 = vmatpush1.msra.mxu0 %v344
    %360 = vmatprep.subr.mxu0 0.0
    %361 = vmatpush1.msra.mxu0 %v345
    %362 = vmatprep.subr.mxu0 0.0
    %363 = vmatpush1.msra.mxu0 %v346
    %364 = vmatprep.subr.mxu0 0.0
    %365 = vmatpush1.msra.mxu0 %v347
    %366 = vmatprep.subr.mxu0 0.0
    %367 = vmatpush1.msra.mxu0 %v348
    %368 = vmatprep.subr.mxu0 0.0
    %369 = vmatpush1.msra.mxu0 %v349
    %370 = vmatprep.subr.mxu0 0.0
    %371 = vmatpush1.msra.mxu0 0.0
    %372 = vmatprep.subr.mxu0 0.0
    %373 = vmatpush1.msra.mxu0 0.0
    %374 = vmatprep.subr.mxu0 0.0
    %375 = vmatpush1.msra.mxu0 0.0
    %376 = vmatprep.subr.mxu0 0.0
    %377 = vmatpush1.msra.mxu0 0.0
    %378 = vmatprep.subr.mxu0 0.0
    %379 = vmatpush1.msra.mxu0 0.0
    %380 = vmatprep.subr.mxu0 0.0
    %381 = vmatpush1.msra.mxu0 0.0
    %382 = vmatprep.subr.mxu0 0.0
    %383 = vmatpush1.msra.mxu0 0.0
    %384 = vmatprep.subr.mxu0 0.0
    %385 = vmatpush1.msra.mxu0 0.0
    %386 = vmatprep.subr.mxu0 0.0
    %387 = vmatpush1.msra.mxu0 0.0
    %388 = vmatprep.subr.mxu0 0.0
    %389 = vmatpush1.msra.mxu0 0.0
    %390 = vmatprep.subr.mxu0 0.0
    %391 = vmatpush1.msra.mxu0 0.0
    %392 = vmatprep.subr.mxu0 0.0
    %393 = vmatpush1.msra.mxu0 0.0
    %394 = vmatprep.subr.mxu0 0.0
    %395 = vmatpush1.msra.mxu0 0.0
    %396 = vmatprep.subr.mxu0 0.0
    %397 = vmatpush1.msra.mxu0 0.0
    %398 = vmatprep.subr.mxu0 0.0
    %399 = vmatpush1.msra.mxu0 0.0
    %400 = vmatprep.subr.mxu0 0.0
    %401 = vmatpush1.msra.mxu0 0.0
    %402 = vmatprep.subr.mxu0 0.0
    %403 = vmatpush1.msra.mxu0 0.0
    %404 = vmatprep.subr.mxu0 0.0
    %405 = vmatpush1.msra.mxu0 0.0
    %406 = vmatprep.subr.mxu0 0.0
    %407 = vmatpush1.msra.mxu0 0.0
    %408 = vmatprep.subr.mxu0 0.0
    %409 = vmatpush1.msra.mxu0 0.0
    %410 = vmatprep.subr.mxu0 0.0
    %411 = vmatpush1.msra.mxu0 0.0
    %412 = vmatprep.subr.mxu0 0.0
    %413 = vmatpush1.msra.mxu0 0.0
    %414 = vmatprep.subr.mxu0 0.0
    %415 = vmatpush1.msra.mxu0 0.0
    %416 = vmatprep.subr.mxu0 0.0
    %417 = vmatpush1.msra.mxu0 0.0
    %418 = vmatprep.mubr.f32.mxu0 0.0
    %419 = vmatmul.mubr.f32.gmra.mrb[0].mxu0 %v352
    %v420 = vpop.f32.mrb[0].mxu0
    %v421 = vadd.f32 %v350, %v420
    %v422 = vpop.f32.mrb[0].mxu0
    %423 = vdwg.mxu0
    %vm424 = vcmask 31744
    %v425 = vsel %vm424, %v421, -inf
    %426 = vmax.xlane.f32.xlu0 %v425
    %v427 = vpop.xlane.xlu0 %426
    %v428 = vsub.f32 %v421, %v427
    %v429 = vmul.f32 %v428, 1.442695
    %v430 = vpow.pop %v429
    %v431 = vsel %vm424, %v430, 0.0
    %432 = vadd.xlane.f32.xlu0 %v431
    %v433 = vpop.xlane.xlu0 %432
    %v434 = vrcp.pop %v433
    %v435 = vmul.f32 %v430, %v434
    %v436 = vld [vmem:[%s2] sm:$0xff]
    %v437 = vld [vmem:[%s2 + $0x8] sm:$0xff]
    %v438 = vld [vmem:[%s2 + $0x10] sm:$0xff]
    %v439 = vld [vmem:[%s2 + $0x18] sm:$0xff]
    %v440 = vld [vmem:[%s2 + $0x20] sm:$0xff]
    %v441 = vld [vmem:[%s2 + $0x28] sm:$0xff]
    %v442 = vld [vmem:[%s2 + $0x30] sm:$0xff]
    %v443 = vld [vmem:[%s2 + $0x38] sm:$0xff]
    %v444 = vld [vmem:[%s4 + $0x6] ss:$0 sm:$0xff]
    %445 = vmatprep.subr.mxu0 0.0
    %446 = vmatpush1.msra.mxu0 %v436
    %447 = vmatprep.subr.mxu0 0.0
    %448 = vmatpush1.msra.mxu0 %v437
    %449 = vmatprep.subr.mxu0 0.0
    %450 = vmatpush1.msra.mxu0 %v438
    %451 = vmatprep.subr.mxu0 0.0
    %452 = vmatpush1.msra.mxu0 %v439
    %453 = vmatprep.subr.mxu0 0.0
    %454 = vmatpush1.msra.mxu0 %v440
    %455 = vmatprep.subr.mxu0 0.0
    %456 = vmatpush1.msra.mxu0 %v441
    %457 = vmatprep.subr.mxu0 0.0
    %458 = vmatpush1.msra.mxu0 %v442
    %459 = vmatprep.subr.mxu0 0.0
    %460 = vmatpush1.msra.mxu0 %v443
    %461 = vmatprep.subr.mxu0 0.0
    %462 = vmatpush1.msra.mxu0 0.0
    %463 = vmatprep.subr.mxu0 0.0
    %464 = vmatpush1.msra.mxu0 0.0
    %465 = vmatprep.subr.mxu0 0.0
    %466 = vmatpush1.msra.mxu0 0.0
    %467 = vmatprep.subr.mxu0 0.0
    %468 = vmatpush1.msra.mxu0 0.0
    %469 = vmatprep.subr.mxu0 0.0
    %470 = vmatpush1.msra.mxu0 0.0
    %471 = vmatprep.subr.mxu0 0.0
    %472 = vmatpush1.msra.mxu0 0.0
    %473 = vmatprep.subr.mxu0 0.0
    %474 = vmatpush1.msra.mxu0 0.0
    %475 = vmatprep.subr.mxu0 0.0
    %476 = vmatpush1.msra.mxu0 0.0
    %477 = vmatprep.subr.mxu0 0.0
    %478 = vmatpush1.msra.mxu0 0.0
    %479 = vmatprep.subr.mxu0 0.0
    %480 = vmatpush1.msra.mxu0 0.0
    %481 = vmatprep.subr.mxu0 0.0
    %482 = vmatpush1.msra.mxu0 0.0
    %483 = vmatprep.subr.mxu0 0.0
    %484 = vmatpush1.msra.mxu0 0.0
    %485 = vmatprep.subr.mxu0 0.0
    %486 = vmatpush1.msra.mxu0 0.0
    %487 = vmatprep.subr.mxu0 0.0
    %488 = vmatpush1.msra.mxu0 0.0
    %489 = vmatprep.subr.mxu0 0.0
    %490 = vmatpush1.msra.mxu0 0.0
    %491 = vmatprep.subr.mxu0 0.0
    %492 = vmatpush1.msra.mxu0 0.0
    %493 = vmatprep.subr.mxu0 0.0
    %494 = vmatpush1.msra.mxu0 0.0
    %495 = vmatprep.subr.mxu0 0.0
    %496 = vmatpush1.msra.mxu0 0.0
    %497 = vmatprep.subr.mxu0 0.0
    %498 = vmatpush1.msra.mxu0 0.0
    %499 = vmatprep.subr.mxu0 0.0
    %500 = vmatpush1.msra.mxu0 0.0
    %501 = vmatprep.subr.mxu0 0.0
    %502 = vmatpush1.msra.mxu0 0.0
    %503 = vmatprep.subr.mxu0 0.0
    %504 = vmatpush1.msra.mxu0 0.0
    %505 = vmatprep.subr.mxu0 0.0
    %506 = vmatpush1.msra.mxu0 0.0
    %507 = vmatprep.subr.mxu0 0.0
    %508 = vmatpush1.msra.mxu0 0.0
    %509 = vmatprep.mubr.f32.mxu0 0.0
    %510 = vmatmul.mubr.f32.gmra.mrb[0].mxu0 %v264
    %v511 = vpop.f32.mrb[0].mxu0
    %v512 = vadd.f32 %v444, %v511
    %v513 = vpop.f32.mrb[0].mxu0
    %514 = vdwg.mxu0
    %516 = vset.pattern.permute.xlu0 0
    %517 = vperm.xlu0 %516, %v435
    %v518 = vpop.permute.xlu0 %517
    %520 = vset.pattern.permute.xlu0 1
    %521 = vperm.xlu0 %520, %v435
    %v522 = vpop.permute.xlu0 %521
    %524 = vset.pattern.permute.xlu0 2
    %525 = vperm.xlu0 %524, %v435
    %v526 = vpop.permute.xlu0 %525
    %528 = vset.pattern.permute.xlu0 3
    %529 = vperm.xlu0 %528, %v435
    %v530 = vpop.permute.xlu0 %529
    %v532 = vld [vmem:[#allocation2] sm:$0xff]
    %v533 = vld [vmem:[#allocation2 + $0x8] sm:$0xff]
    %v534 = vld [vmem:[#allocation2 + $0x10] sm:$0xff]
    %v535 = vld [vmem:[#allocation2 + $0x18] sm:$0xff]
    %v536 = vld [vmem:[#allocation2 + $0x20] sm:$0xff]
    %v537 = vld [vmem:[#allocation2 + $0x28] sm:$0xff]
    %v538 = vld [vmem:[#allocation2 + $0x30] sm:$0xff]
    %v539 = vld [vmem:[#allocation2 + $0x38] sm:$0xff]
    %v540 = vld [vmem:[#allocation2 + $0x40] sm:$0xff]
    %v541 = vld [vmem:[#allocation2 + $0x48] sm:$0xff]
    %v542 = vld [vmem:[#allocation2 + $0x50] sm:$0xff]
    %v543 = vld [vmem:[#allocation2 + $0x58] sm:$0xff]
    %v544 = vld [vmem:[#allocation2 + $0x60] sm:$0xff]
    %v545 = vld [vmem:[#allocation2 + $0x68] sm:$0xff]
    %v546 = vld [vmem:[#allocation2 + $0x70] sm:$0xff]
    %v547 = vld [vmem:[#allocation2 + $0x78] sm:$0xff]
    %v548 = vld [vmem:[#allocation2 + $0x80] sm:$0xff]
    %v549 = vld [vmem:[#allocation2 + $0x88] sm:$0xff]
    %v550 = vld [vmem:[#allocation2 + $0x90] sm:$0xff]
    %v551 = vld [vmem:[#allocation2 + $0x98] sm:$0xff]
    %v552 = vld [vmem:[#allocation2 + $0xa0] sm:$0xff]
    %v553 = vld [vmem:[#allocation2 + $0xa8] sm:$0xff]
    %v554 = vld [vmem:[#allocation2 + $0xb0] sm:$0xff]
    %v555 = vld [vmem:[#allocation2 + $0xb8] sm:$0xff]
    %v556 = vld [vmem:[#allocation2 + $0xc0] sm:$0xff]
    %v557 = vld [vmem:[#allocation2 + $0xc8] sm:$0xff]
    %v558 = vld [vmem:[#allocation2 + $0xd0] sm:$0xff]
    %v559 = vld [vmem:[#allocation2 + $0xd8] sm:$0xff]
    %v560 = vld [vmem:[#allocation2 + $0xe0] sm:$0xff]
    %v561 = vld [vmem:[#allocation2 + $0xe8] sm:$0xff]
    %v562 = vld [vmem:[#allocation2 + $0xf0] sm:$0xff]
    %v563 = vld [vmem:[#allocation2 + $0xf8] sm:$0xff]
    %v564 = vld [vmem:[#allocation2 + $0x100] sm:$0xff]
    %v565 = vld [vmem:[#allocation2 + $0x108] sm:$0xff]
    %v566 = vld [vmem:[#allocation2 + $0x110] sm:$0xff]
    %v567 = vld [vmem:[#allocation2 + $0x118] sm:$0xff]
    %v568 = vld [vmem:[#allocation2 + $0x120] sm:$0xff]
    %v569 = vld [vmem:[#allocation2 + $0x128] sm:$0xff]
    %v570 = vld [vmem:[#allocation2 + $0x130] sm:$0xff]
    %v571 = vld [vmem:[#allocation2 + $0x138] sm:$0xff]
    %v572 = vld [vmem:[#allocation2 + $0x140] sm:$0xff]
    %v573 = vld [vmem:[#allocation2 + $0x148] sm:$0xff]
    %v574 = vld [vmem:[#allocation2 + $0x150] sm:$0xff]
    %v575 = vld [vmem:[#allocation2 + $0x158] sm:$0xff]
    %v576 = vld [vmem:[#allocation2 + $0x160] sm:$0xff]
    %v577 = vld [vmem:[#allocation2 + $0x168] sm:$0xff]
    %v578 = vld [vmem:[#allocation2 + $0x170] sm:$0xff]
    %v579 = vld [vmem:[#allocation2 + $0x178] sm:$0xff]
    %v580 = vld [vmem:[#allocation2 + $0x180] sm:$0xff]
    %v581 = vld [vmem:[#allocation2 + $0x188] sm:$0xff]
    %v582 = vld [vmem:[#allocation2 + $0x190] sm:$0xff]
    %v583 = vld [vmem:[#allocation2 + $0x198] sm:$0xff]
    %v584 = vld [vmem:[#allocation2 + $0x1a0] sm:$0xff]
    %v585 = vld [vmem:[#allocation2 + $0x1a8] sm:$0xff]
    %v586 = vld [vmem:[#allocation2 + $0x1b0] sm:$0xff]
    %v587 = vld [vmem:[#allocation2 + $0x1b8] sm:$0xff]
    %v588 = vld [vmem:[#allocation2 + $0x1c0] sm:$0xff]
    %v589 = vld [vmem:[#allocation2 + $0x1c8] sm:$0xff]
    %v590 = vld [vmem:[#allocation2 + $0x1d0] sm:$0xff]
    %v591 = vld [vmem:[#allocation2 + $0x1d8] sm:$0xff]
    %v592 = vld [vmem:[#allocation2 + $0x1e0] sm:$0xff]
    %v593 = vld [vmem:[#allocation2 + $0x1e8] sm:$0xff]
    %v594 = vld [vmem:[#allocation2 + $0x1f0] sm:$0xff]
    %v595 = vld [vmem:[#allocation2 + $0x1f8] sm:$0xff]
    %s596 = scalar_lea.vmem [#allocation2], 512
    %v597 = vld [vmem:[%s596] sm:$0xff]
    %v598 = vld [vmem:[%s596 + $0x8] sm:$0xff]
    %v599 = vld [vmem:[%s596 + $0x10] sm:$0xff]
    %v600 = vld [vmem:[%s596 + $0x18] sm:$0xff]
    %v601 = vld [vmem:[%s596 + $0x20] sm:$0xff]
    %v602 = vld [vmem:[%s596 + $0x28] sm:$0xff]
    %v603 = vld [vmem:[%s596 + $0x30] sm:$0xff]
    %v604 = vld [vmem:[%s596 + $0x38] sm:$0xff]
    %v605 = vld [vmem:[%s596 + $0x40] sm:$0xff]
    %v606 = vld [vmem:[%s596 + $0x48] sm:$0xff]
    %v607 = vld [vmem:[%s596 + $0x50] sm:$0xff]
    %v608 = vld [vmem:[%s596 + $0x58] sm:$0xff]
    %v609 = vld [vmem:[%s596 + $0x60] sm:$0xff]
    %v610 = vld [vmem:[%s596 + $0x68] sm:$0xff]
    %v611 = vld [vmem:[%s596 + $0x70] sm:$0xff]
    %v612 = vld [vmem:[%s596 + $0x78] sm:$0xff]
    %v613 = vld [vmem:[%s596 + $0x80] sm:$0xff]
    %v614 = vld [vmem:[%s596 + $0x88] sm:$0xff]
    %v615 = vld [vmem:[%s596 + $0x90] sm:$0xff]
    %v616 = vld [vmem:[%s596 + $0x98] sm:$0xff]
    %v617 = vld [vmem:[%s596 + $0xa0] sm:$0xff]
    %v618 = vld [vmem:[%s596 + $0xa8] sm:$0xff]
    %v619 = vld [vmem:[%s596 + $0xb0] sm:$0xff]
    %v620 = vld [vmem:[%s596 + $0xb8] sm:$0xff]
    %v621 = vld [vmem:[%s596 + $0xc0] sm:$0xff]
    %v622 = vld [vmem:[%s596 + $0xc8] sm:$0xff]
    %v623 = vld [vmem:[%s596 + $0xd0] sm:$0xff]
    %v624 = vld [vmem:[%s596 + $0xd8] sm:$0xff]
    %v625 = vld [vmem:[%s596 + $0xe0] sm:$0xff]
    %v626 = vld [vmem:[%s596 + $0xe8] sm:$0xff]
    %v627 = vld [vmem:[%s596 + $0xf0] sm:$0xff]
    %v628 = vld [vmem:[%s596 + $0xf8] sm:$0xff]
    %v629 = vld [vmem:[%s596 + $0x100] sm:$0xff]
    %v630 = vld [vmem:[%s596 + $0x108] sm:$0xff]
    %v631 = vld [vmem:[%s596 + $0x110] sm:$0xff]
    %v632 = vld [vmem:[%s596 + $0x118] sm:$0xff]
    %v633 = vld [vmem:[%s596 + $0x120] sm:$0xff]
    %v634 = vld [vmem:[%s596 + $0x128] sm:$0xff]
    %v635 = vld [vmem:[%s596 + $0x130] sm:$0xff]
    %v636 = vld [vmem:[%s596 + $0x138] sm:$0xff]
    %v637 = vld [vmem:[%s596 + $0x140] sm:$0xff]
    %v638 = vld [vmem:[%s596 + $0x148] sm:$0xff]
    %v639 = vld [vmem:[%s596 + $0x150] sm:$0xff]
    %v640 = vld [vmem:[%s596 + $0x158] sm:$0xff]
    %v641 = vld [vmem:[%s596 + $0x160] sm:$0xff]
    %v642 = vld [vmem:[%s596 + $0x168] sm:$0xff]
    %v643 = vld [vmem:[%s596 + $0x170] sm:$0xff]
    %v644 = vld [vmem:[%s596 + $0x178] sm:$0xff]
    %v645 = vld [vmem:[%s596 + $0x180] sm:$0xff]
    %v646 = vld [vmem:[%s596 + $0x188] sm:$0xff]
    %v647 = vld [vmem:[%s596 + $0x190] sm:$0xff]
    %v648 = vld [vmem:[%s596 + $0x198] sm:$0xff]
    %v649 = vld [vmem:[%s596 + $0x1a0] sm:$0xff]
    %v650 = vld [vmem:[%s596 + $0x1a8] sm:$0xff]
    %v651 = vld [vmem:[%s596 + $0x1b0] sm:$0xff]
    %v652 = vld [vmem:[%s596 + $0x1b8] sm:$0xff]
    %v653 = vld [vmem:[%s596 + $0x1c0] sm:$0xff]
    %v654 = vld [vmem:[%s596 + $0x1c8] sm:$0xff]
    %v655 = vld [vmem:[%s596 + $0x1d0] sm:$0xff]
    %v656 = vld [vmem:[%s596 + $0x1d8] sm:$0xff]
    %v657 = vld [vmem:[%s596 + $0x1e0] sm:$0xff]
    %v658 = vld [vmem:[%s596 + $0x1e8] sm:$0xff]
    %v659 = vld [vmem:[%s596 + $0x1f0] sm:$0xff]
    %v660 = vld [vmem:[%s596 + $0x1f8] sm:$0xff]
    %661 = vmatprep.subr.mxu0 %v598
    %662 = vmatpush1.msra.mxu0 %v597
    %663 = vmatprep.subr.mxu0 %v602
    %664 = vmatpush1.msra.mxu0 %v601
    %665 = vmatprep.subr.mxu0 %v606
    %666 = vmatpush1.msra.mxu0 %v605
    %667 = vmatprep.subr.mxu0 %v610
    %668 = vmatpush1.msra.mxu0 %v609
    %669 = vmatprep.subr.mxu0 %v614
    %670 = vmatpush1.msra.mxu0 %v613
    %671 = vmatprep.subr.mxu0 %v618
    %672 = vmatpush1.msra.mxu0 %v617
    %673 = vmatprep.subr.mxu0 %v622
    %674 = vmatpush1.msra.mxu0 %v621
    %675 = vmatprep.subr.mxu0 %v626
    %676 = vmatpush1.msra.mxu0 %v625
    %677 = vmatprep.subr.mxu0 %v630
    %678 = vmatpush1.msra.mxu0 %v629
    %679 = vmatprep.subr.mxu0 %v634
    %680 = vmatpush1.msra.mxu0 %v633
    %681 = vmatprep.subr.mxu0 %v638
    %682 = vmatpush1.msra.mxu0 %v637
    %683 = vmatprep.subr.mxu0 %v642
    %684 = vmatpush1.msra.mxu0 %v641
    %685 = vmatprep.subr.mxu0 %v646
    %686 = vmatpush1.msra.mxu0 %v645
    %687 = vmatprep.subr.mxu0 %v650
    %688 = vmatpush1.msra.mxu0 %v649
    %689 = vmatprep.subr.mxu0 %v654
    %690 = vmatpush1.msra.mxu0 %v653
    %691 = vmatprep.subr.mxu0 %v658
    %692 = vmatpush1.msra.mxu0 %v657
    %693 = vmatprep.subr.mxu0 0.0
    %694 = vmatpush1.msra.mxu0 0.0
    %695 = vmatprep.subr.mxu0 0.0
    %696 = vmatpush1.msra.mxu0 0.0
    %697 = vmatprep.subr.mxu0 0.0
    %698 = vmatpush1.msra.mxu0 0.0
    %699 = vmatprep.subr.mxu0 0.0
    %700 = vmatpush1.msra.mxu0 0.0
    %701 = vmatprep.subr.mxu0 0.0
    %702 = vmatpush1.msra.mxu0 0.0
    %703 = vmatprep.subr.mxu0 0.0
    %704 = vmatpush1.msra.mxu0 0.0
    %705 = vmatprep.subr.mxu0 0.0
    %706 = vmatpush1.msra.mxu0 0.0
    %707 = vmatprep.subr.mxu0 0.0
    %708 = vmatpush1.msra.mxu0 0.0
    %709 = vmatprep.subr.mxu0 0.0
    %710 = vmatpush1.msra.mxu0 0.0
    %711 = vmatprep.subr.mxu0 0.0
    %712 = vmatpush1.msra.mxu0 0.0
    %713 = vmatprep.subr.mxu0 0.0
    %714 = vmatpush1.msra.mxu0 0.0
    %715 = vmatprep.subr.mxu0 0.0
    %716 = vmatpush1.msra.mxu0 0.0
    %717 = vmatprep.subr.mxu0 0.0
    %718 = vmatpush1.msra.mxu0 0.0
    %719 = vmatprep.subr.mxu0 0.0
    %720 = vmatpush1.msra.mxu0 0.0
    %721 = vmatprep.subr.mxu0 0.0
    %722 = vmatpush1.msra.mxu0 0.0
    %723 = vmatprep.subr.mxu0 0.0
    %724 = vmatpush1.msra.mxu0 0.0
    %725 = vmatprep.mubr.f32.mxu0 0.0
    %726 = vmatmul.mubr.f32.gmra.mrb[0].mxu0 %v36
    %v727 = vpop.f32.mrb[0].mxu0
    %v728 = vadd.f32 0.0, %v727
    %v729 = vpop.f32.mrb[0].mxu0
    %v730 = vadd.f32 0.0, %v729
    %731 = vdwg.mxu0
    %732 = vmatprep.subr.mxu0 %v600
    %733 = vmatpush1.msra.mxu0 %v599
    %734 = vmatprep.subr.mxu0 %v604
    %735 = vmatpush1.msra.mxu0 %v603
    %736 = vmatprep.subr.mxu0 %v608
    %737 = vmatpush1.msra.mxu0 %v607
    %738 = vmatprep.subr.mxu0 %v612
    %739 = vmatpush1.msra.mxu0 %v611
    %740 = vmatprep.subr.mxu0 %v616
    %741 = vmatpush1.msra.mxu0 %v615
    %742 = vmatprep.subr.mxu0 %v620
    %743 = vmatpush1.msra.mxu0 %v619
    %744 = vmatprep.subr.mxu0 %v624
    %745 = vmatpush1.msra.mxu0 %v623
    %746 = vmatprep.subr.mxu0 %v628
    %747 = vmatpush1.msra.mxu0 %v627
    %748 = vmatprep.subr.mxu0 %v632
    %749 = vmatpush1.msra.mxu0 %v631
    %750 = vmatprep.subr.mxu0 %v636
    %751 = vmatpush1.msra.mxu0 %v635
    %752 = vmatprep.subr.mxu0 %v640
    %753 = vmatpush1.msra.mxu0 %v639
    %754 = vmatprep.subr.mxu0 %v644
    %755 = vmatpush1.msra.mxu0 %v643
    %756 = vmatprep.subr.mxu0 %v648
    %757 = vmatpush1.msra.mxu0 %v647
    %758 = vmatprep.subr.mxu0 %v652
    %759 = vmatpush1.msra.mxu0 %v651
    %760 = vmatprep.subr.mxu0 %v656
    %761 = vmatpush1.msra.mxu0 %v655
    %762 = vmatprep.subr.mxu0 %v660
    %763 = vmatpush1.msra.mxu0 %v659
    %764 = vmatprep.subr.mxu0 0.0
    %765 = vmatpush1.msra.mxu0 0.0
    %766 = vmatprep.subr.mxu0 0.0
    %767 = vmatpush1.msra.mxu0 0.0
    %768 = vmatprep.subr.mxu0 0.0
    %769 = vmatpush1.msra.mxu0 0.0
    %770 = vmatprep.subr.mxu0 0.0
    %771 = vmatpush1.msra.mxu0 0.0
    %772 = vmatprep.subr.mxu0 0.0
    %773 = vmatpush1.msra.mxu0 0.0
    %774 = vmatprep.subr.mxu0 0.0
    %775 = vmatpush1.msra.mxu0 0.0
    %776 = vmatprep.subr.mxu0 0.0
    %777 = vmatpush1.msra.mxu0 0.0
    %778 = vmatprep.subr.mxu0 0.0
    %779 = vmatpush1.msra.mxu0 0.0
    %780 = vmatprep.subr.mxu0 0.0
    %781 = vmatpush1.msra.mxu0 0.0
    %782 = vmatprep.subr.mxu0 0.0
    %783 = vmatpush1.msra.mxu0 0.0
    %784 = vmatprep.subr.mxu0 0.0
    %785 = vmatpush1.msra.mxu0 0.0
    %786 = vmatprep.subr.mxu0 0.0
    %787 = vmatpush1.msra.mxu0 0.0
    %788 = vmatprep.subr.mxu0 0.0
    %789 = vmatpush1.msra.mxu0 0.0
    %790 = vmatprep.subr.mxu0 0.0
    %791 = vmatpush1.msra.mxu0 0.0
    %792 = vmatprep.subr.mxu0 0.0
    %793 = vmatpush1.msra.mxu0 0.0
    %794 = vmatprep.subr.mxu0 0.0
    %795 = vmatpush1.msra.mxu0 0.0
    %796 = vmatprep.mubr.f32.mxu0 0.0
    %797 = vmatmul.mubr.f32.gmra.mrb[0].mxu0 %v36
    %v798 = vpop.f32.mrb[0].mxu0
    %v799 = vadd.f32 0.0, %v798
    %v800 = vpop.f32.mrb[0].mxu0
    %v801 = vadd.f32 0.0, %v800
    %802 = vdwg.mxu0
    %803 = vmatprep.subr.mxu0 %v533
    %804 = vmatpush1.msra.mxu0 %v532
    %805 = vmatprep.subr.mxu0 %v537
    %806 = vmatpush1.msra.mxu0 %v536
    %807 = vmatprep.subr.mxu0 %v541
    %808 = vmatpush1.msra.mxu0 %v540
    %809 = vmatprep.subr.mxu0 %v545
    %810 = vmatpush1.msra.mxu0 %v544
    %811 = vmatprep.subr.mxu0 %v549
    %812 = vmatpush1.msra.mxu0 %v548
    %813 = vmatprep.subr.mxu0 %v553
    %814 = vmatpush1.msra.mxu0 %v552
    %815 = vmatprep.subr.mxu0 %v557
    %816 = vmatpush1.msra.mxu0 %v556
    %817 = vmatprep.subr.mxu0 %v561
    %818 = vmatpush1.msra.mxu0 %v560
    %819 = vmatprep.subr.mxu0 %v565
    %820 = vmatpush1.msra.mxu0 %v564
    %821 = vmatprep.subr.mxu0 %v569
    %822 = vmatpush1.msra.mxu0 %v568
    %823 = vmatprep.subr.mxu0 %v573
    %824 = vmatpush1.msra.mxu0 %v572
    %825 = vmatprep.subr.mxu0 %v577
    %826 = vmatpush1.msra.mxu0 %v576
    %827 = vmatprep.subr.mxu0 %v581
    %828 = vmatpush1.msra.mxu0 %v580
    %829 = vmatprep.subr.mxu0 %v585
    %830 = vmatpush1.msra.mxu0 %v584
    %831 = vmatprep.subr.mxu0 %v589
    %832 = vmatpush1.msra.mxu0 %v588
    %833 = vmatprep.subr.mxu0 %v593
    %834 = vmatpush1.msra.mxu0 %v592
    %835 = vmatprep.subr.mxu0 0.0
    %836 = vmatpush1.msra.mxu0 0.0
    %837 = vmatprep.subr.mxu0 0.0
    %838 = vmatpush1.msra.mxu0 0.0
    %839 = vmatprep.subr.mxu0 0.0
    %840 = vmatpush1.msra.mxu0 0.0
    %841 = vmatprep.subr.mxu0 0.0
    %842 = vmatpush1.msra.mxu0 0.0
    %843 = vmatprep.subr.mxu0 0.0
    %844 = vmatpush1.msra.mxu0 0.0
    %845 = vmatprep.subr.mxu0 0.0
    %846 = vmatpush1.msra.mxu0 0.0
    %847 = vmatprep.subr.mxu0 0.0
    %848 = vmatpush1.msra.mxu0 0.0
    %849 = vmatprep.subr.mxu0 0.0
    %850 = vmatpush1.msra.mxu0 0.0
    %851 = vmatprep.subr.mxu0 0.0
    %852 = vmatpush1.msra.mxu0 0.0
    %853 = vmatprep.subr.mxu0 0.0
    %854 = vmatpush1.msra.mxu0 0.0
    %855 = vmatprep.subr.mxu0 0.0
    %856 = vmatpush1.msra.mxu0 0.0
    %857 = vmatprep.subr.mxu0 0.0
    %858 = vmatpush1.msra.mxu0 0.0
    %859 = vmatprep.subr.mxu0 0.0
    %860 = vmatpush1.msra.mxu0 0.0
    %861 = vmatprep.subr.mxu0 0.0
    %862 = vmatpush1.msra.mxu0 0.0
    %863 = vmatprep.subr.mxu0 0.0
    %864 = vmatpush1.msra.mxu0 0.0
    %865 = vmatprep.subr.mxu0 0.0
    %866 = vmatpush1.msra.mxu0 0.0
    %867 = vmatprep.mubr.f32.mxu0 0.0
    %868 = vmatmul.mubr.f32.gmra.mrb[0].mxu0 %v512
    %v869 = vpop.f32.mrb[0].mxu0
    %v870 = vadd.f32 %v728, %v869
    %v871 = vpop.f32.mrb[0].mxu0
    %v872 = vadd.f32 %v730, %v871
    %873 = vdwg.mxu0
    %874 = vmatprep.subr.mxu0 %v535
    %875 = vmatpush1.msra.mxu0 %v534
    %876 = vmatprep.subr.mxu0 %v539
    %877 = vmatpush1.msra.mxu0 %v538
    %878 = vmatprep.subr.mxu0 %v543
    %879 = vmatpush1.msra.mxu0 %v542
    %880 = vmatprep.subr.mxu0 %v547
    %881 = vmatpush1.msra.mxu0 %v546
    %882 = vmatprep.subr.mxu0 %v551
    %883 = vmatpush1.msra.mxu0 %v550
    %884 = vmatprep.subr.mxu0 %v555
    %885 = vmatpush1.msra.mxu0 %v554
    %886 = vmatprep.subr.mxu0 %v559
    %887 = vmatpush1.msra.mxu0 %v558
    %888 = vmatprep.subr.mxu0 %v563
    %889 = vmatpush1.msra.mxu0 %v562
    %890 = vmatprep.subr.mxu0 %v567
    %891 = vmatpush1.msra.mxu0 %v566
    %892 = vmatprep.subr.mxu0 %v571
    %893 = vmatpush1.msra.mxu0 %v570
    %894 = vmatprep.subr.mxu0 %v575
    %895 = vmatpush1.msra.mxu0 %v574
    %896 = vmatprep.subr.mxu0 %v579
    %897 = vmatpush1.msra.mxu0 %v578
    %898 = vmatprep.subr.mxu0 %v583
    %899 = vmatpush1.msra.mxu0 %v582
    %900 = vmatprep.subr.mxu0 %v587
    %901 = vmatpush1.msra.mxu0 %v586
    %902 = vmatprep.subr.mxu0 %v591
    %903 = vmatpush1.msra.mxu0 %v590
    %904 = vmatprep.subr.mxu0 %v595
    %905 = vmatpush1.msra.mxu0 %v594
    %906 = vmatprep.subr.mxu0 0.0
    %907 = vmatpush1.msra.mxu0 0.0
    %908 = vmatprep.subr.mxu0 0.0
    %909 = vmatpush1.msra.mxu0 0.0
    %910 = vmatprep.subr.mxu0 0.0
    %911 = vmatpush1.msra.mxu0 0.0
    %912 = vmatprep.subr.mxu0 0.0
    %913 = vmatpush1.msra.mxu0 0.0
    %914 = vmatprep.subr.mxu0 0.0
    %915 = vmatpush1.msra.mxu0 0.0
    %916 = vmatprep.subr.mxu0 0.0
    %917 = vmatpush1.msra.mxu0 0.0
    %918 = vmatprep.subr.mxu0 0.0
    %919 = vmatpush1.msra.mxu0 0.0
    %920 = vmatprep.subr.mxu0 0.0
    %921 = vmatpush1.msra.mxu0 0.0
    %922 = vmatprep.subr.mxu0 0.0
    %923 = vmatpush1.msra.mxu0 0.0
    %924 = vmatprep.subr.mxu0 0.0
    %925 = vmatpush1.msra.mxu0 0.0
    %926 = vmatprep.subr.mxu0 0.0
    %927 = vmatpush1.msra.mxu0 0.0
    %928 = vmatprep.subr.mxu0 0.0
    %929 = vmatpush1.msra.mxu0 0.0
    %930 = vmatprep.subr.mxu0 0.0
    %931 = vmatpush1.msra.mxu0 0.0
    %932 = vmatprep.subr.mxu0 0.0
    %933 = vmatpush1.msra.mxu0 0.0
    %934 = vmatprep.subr.mxu0 0.0
    %935 = vmatpush1.msra.mxu0 0.0
    %936 = vmatprep.subr.mxu0 0.0
    %937 = vmatpush1.msra.mxu0 0.0
    %938 = vmatprep.mubr.f32.mxu0 0.0
    %939 = vmatmul.mubr.f32.gmra.mrb[0].mxu0 %v512
    %v940 = vpop.f32.mrb[0].mxu0
    %v941 = vadd.f32 %v799, %v940
    %v942 = vpop.f32.mrb[0].mxu0
    %v943 = vadd.f32 %v801, %v942
    %944 = vdwg.mxu0
    %s945 = scalar_lea.vmem %s4, 33
    %v946 = vld [vmem:[%s945] ss:$8 sm:$0xf]
    %v948 = vlaneseq
    %v949 = vshrl.u32 %v948, 7
    %v950 = vsub.s32 0, %v949
    %v951 = vrot.slane %v946, %v950
    %v952 = vlaneseq
    %v953 = vshrl.u32 %v952, 7
    %v954 = vsub.s32 1, %v953
    %v955 = vrot.slane %v946, %v954
    %v956 = vlaneseq
    %v957 = vshrl.u32 %v956, 7
    %v958 = vsub.s32 2, %v957
    %v959 = vrot.slane %v946, %v958
    %v960 = vlaneseq
    %v961 = vshrl.u32 %v960, 7
    %v962 = vsub.s32 3, %v961
    %v963 = vrot.slane %v946, %v962
    %v968 = vadd.f32 %v870, %v951
    %v969 = vadd.f32 %v872, %v955
    %v970 = vadd.f32 %v941, %v959
    %v971 = vadd.f32 %v943, %v963
    %v972 = vmul.f32 %v518, %v968
    %v973 = vmul.f32 %v522, %v969
    %v974 = vadd.f32 %v972, %v973
    %v975 = vmul.f32 %v526, %v970
    %v976 = vadd.f32 %v974, %v975
    %v977 = vmul.f32 %v530, %v971
    %v978 = vadd.f32 %v976, %v977
    %vm979 = vcmp.gt.f32.partialorder %v978, 0.0
    %v980 = vmin.f32 %v978, 0.0
    %v981 = vmul.f32 %v980, 1.442695
    %v982 = vpow.pop %v981
    %v983 = vsub.f32 %v982, 1.0
    %v984 = vsel %vm979, %v978, %v983
    %s985 = scalar_lea.vmem [#allocation2], 1024
    %v986 = vld [vmem:[%s985] sm:$0xff]
    %v987 = vld [vmem:[%s985 + $0x8] sm:$0xff]
    %v988 = vld [vmem:[%s985 + $0x10] sm:$0xff]
    %v989 = vld [vmem:[%s985 + $0x18] sm:$0xff]
    %v990 = vld [vmem:[%s985 + $0x20] sm:$0xff]
    %v991 = vld [vmem:[%s985 + $0x28] sm:$0xff]
    %v992 = vld [vmem:[%s985 + $0x30] sm:$0xff]
    %v993 = vld [vmem:[%s985 + $0x38] sm:$0xff]
    %v994 = vld [vmem:[%s985 + $0x40] sm:$0xff]
    %v995 = vld [vmem:[%s985 + $0x48] sm:$0xff]
    %v996 = vld [vmem:[%s985 + $0x50] sm:$0xff]
    %v997 = vld [vmem:[%s985 + $0x58] sm:$0xff]
    %v998 = vld [vmem:[%s985 + $0x60] sm:$0xff]
    %v999 = vld [vmem:[%s985 + $0x68] sm:$0xff]
    %v1000 = vld [vmem:[%s985 + $0x70] sm:$0xff]
    %v1001 = vld [vmem:[%s985 + $0x78] sm:$0xff]
    %v1002 = vld [vmem:[%s985 + $0x80] sm:$0xff]
    %v1003 = vld [vmem:[%s985 + $0x88] sm:$0xff]
    %v1004 = vld [vmem:[%s985 + $0x90] sm:$0xff]
    %v1005 = vld [vmem:[%s985 + $0x98] sm:$0xff]
    %v1006 = vld [vmem:[%s985 + $0xa0] sm:$0xff]
    %v1007 = vld [vmem:[%s985 + $0xa8] sm:$0xff]
    %v1008 = vld [vmem:[%s985 + $0xb0] sm:$0xff]
    %v1009 = vld [vmem:[%s985 + $0xb8] sm:$0xff]
    %v1010 = vld [vmem:[%s985 + $0xc0] sm:$0xff]
    %v1011 = vld [vmem:[%s985 + $0xc8] sm:$0xff]
    %v1012 = vld [vmem:[%s985 + $0xd0] sm:$0xff]
    %v1013 = vld [vmem:[%s985 + $0xd8] sm:$0xff]
    %v1014 = vld [vmem:[%s985 + $0xe0] sm:$0xff]
    %v1015 = vld [vmem:[%s985 + $0xe8] sm:$0xff]
    %v1016 = vld [vmem:[%s985 + $0xf0] sm:$0xff]
    %v1017 = vld [vmem:[%s985 + $0xf8] sm:$0xff]
    %v1018 = vld [vmem:[%s985 + $0x100] sm:$0xff]
    %v1019 = vld [vmem:[%s985 + $0x108] sm:$0xff]
    %v1020 = vld [vmem:[%s985 + $0x110] sm:$0xff]
    %v1021 = vld [vmem:[%s985 + $0x118] sm:$0xff]
    %v1022 = vld [vmem:[%s985 + $0x120] sm:$0xff]
    %v1023 = vld [vmem:[%s985 + $0x128] sm:$0xff]
    %v1024 = vld [vmem:[%s985 + $0x130] sm:$0xff]
    %v1025 = vld [vmem:[%s985 + $0x138] sm:$0xff]
    %v1026 = vld [vmem:[%s985 + $0x140] sm:$0xff]
    %v1027 = vld [vmem:[%s985 + $0x148] sm:$0xff]
    %v1028 = vld [vmem:[%s985 + $0x150] sm:$0xff]
    %v1029 = vld [vmem:[%s985 + $0x158] sm:$0xff]
    %v1030 = vld [vmem:[%s985 + $0x160] sm:$0xff]
    %v1031 = vld [vmem:[%s985 + $0x168] sm:$0xff]
    %v1032 = vld [vmem:[%s985 + $0x170] sm:$0xff]
    %v1033 = vld [vmem:[%s985 + $0x178] sm:$0xff]
    %v1034 = vld [vmem:[%s985 + $0x180] sm:$0xff]
    %v1035 = vld [vmem:[%s985 + $0x188] sm:$0xff]
    %v1036 = vld [vmem:[%s985 + $0x190] sm:$0xff]
    %v1037 = vld [vmem:[%s985 + $0x198] sm:$0xff]
    %v1038 = vld [vmem:[%s985 + $0x1a0] sm:$0xff]
    %v1039 = vld [vmem:[%s985 + $0x1a8] sm:$0xff]
    %v1040 = vld [vmem:[%s985 + $0x1b0] sm:$0xff]
    %v1041 = vld [vmem:[%s985 + $0x1b8] sm:$0xff]
    %v1042 = vld [vmem:[%s985 + $0x1c0] sm:$0xff]
    %v1043 = vld [vmem:[%s985 + $0x1c8] sm:$0xff]
    %v1044 = vld [vmem:[%s985 + $0x1d0] sm:$0xff]
    %v1045 = vld [vmem:[%s985 + $0x1d8] sm:$0xff]
    %v1046 = vld [vmem:[%s985 + $0x1e0] sm:$0xff]
    %v1047 = vld [vmem:[%s985 + $0x1e8] sm:$0xff]
    %v1048 = vld [vmem:[%s985 + $0x1f0] sm:$0xff]
    %v1049 = vld [vmem:[%s985 + $0x1f8] sm:$0xff]
    %s1050 = scalar_lea.vmem %s4, 34
    %v1051 = vld [vmem:[%s1050] ss:$8 sm:$0xf]
    %v1053 = vlaneseq
    %v1054 = vshrl.u32 %v1053, 7
    %v1055 = vsub.s32 0, %v1054
    %v1056 = vrot.slane %v1051, %v1055
    %v1057 = vlaneseq
    %v1058 = vshrl.u32 %v1057, 7
    %v1059 = vsub.s32 1, %v1058
    %v1060 = vrot.slane %v1051, %v1059
    %v1061 = vlaneseq
    %v1062 = vshrl.u32 %v1061, 7
    %v1063 = vsub.s32 2, %v1062
    %v1064 = vrot.slane %v1051, %v1063
    %v1065 = vlaneseq
    %v1066 = vshrl.u32 %v1065, 7
    %v1067 = vsub.s32 3, %v1066
    %v1068 = vrot.slane %v1051, %v1067
    %1073 = vmatprep.subr.mxu0 %v987
    %1074 = vmatpush1.msra.mxu0 %v986
    %1075 = vmatprep.subr.mxu0 %v991
    %1076 = vmatpush1.msra.mxu0 %v990
    %1077 = vmatprep.subr.mxu0 %v995
    %1078 = vmatpush1.msra.mxu0 %v994
    %1079 = vmatprep.subr.mxu0 %v999
    %1080 = vmatpush1.msra.mxu0 %v998
    %1081 = vmatprep.subr.mxu0 %v1003
    %1082 = vmatpush1.msra.mxu0 %v1002
    %1083 = vmatprep.subr.mxu0 %v1007
    %1084 = vmatpush1.msra.mxu0 %v1006
    %1085 = vmatprep.subr.mxu0 %v1011
    %1086 = vmatpush1.msra.mxu0 %v1010
    %1087 = vmatprep.subr.mxu0 %v1015
    %1088 = vmatpush1.msra.mxu0 %v1014
    %1089 = vmatprep.subr.mxu0 %v1019
    %1090 = vmatpush1.msra.mxu0 %v1018
    %1091 = vmatprep.subr.mxu0 %v1023
    %1092 = vmatpush1.msra.mxu0 %v1022
    %1093 = vmatprep.subr.mxu0 %v1027
    %1094 = vmatpush1.msra.mxu0 %v1026
    %1095 = vmatprep.subr.mxu0 %v1031
    %1096 = vmatpush1.msra.mxu0 %v1030
    %1097 = vmatprep.subr.mxu0 %v1035
    %1098 = vmatpush1.msra.mxu0 %v1034
    %1099 = vmatprep.subr.mxu0 %v1039
    %1100 = vmatpush1.msra.mxu0 %v1038
    %1101 = vmatprep.subr.mxu0 %v1043
    %1102 = vmatpush1.msra.mxu0 %v1042
    %1103 = vmatprep.subr.mxu0 %v1047
    %1104 = vmatpush1.msra.mxu0 %v1046
    %1105 = vmatprep.subr.mxu0 0.0
    %1106 = vmatpush1.msra.mxu0 0.0
    %1107 = vmatprep.subr.mxu0 0.0
    %1108 = vmatpush1.msra.mxu0 0.0
    %1109 = vmatprep.subr.mxu0 0.0
    %1110 = vmatpush1.msra.mxu0 0.0
    %1111 = vmatprep.subr.mxu0 0.0
    %1112 = vmatpush1.msra.mxu0 0.0
    %1113 = vmatprep.subr.mxu0 0.0
    %1114 = vmatpush1.msra.mxu0 0.0
    %1115 = vmatprep.subr.mxu0 0.0
    %1116 = vmatpush1.msra.mxu0 0.0
    %1117 = vmatprep.subr.mxu0 0.0
    %1118 = vmatpush1.msra.mxu0 0.0
    %1119 = vmatprep.subr.mxu0 0.0
    %1120 = vmatpush1.msra.mxu0 0.0
    %1121 = vmatprep.subr.mxu0 0.0
    %1122 = vmatpush1.msra.mxu0 0.0
    %1123 = vmatprep.subr.mxu0 0.0
    %1124 = vmatpush1.msra.mxu0 0.0
    %1125 = vmatprep.subr.mxu0 0.0
    %1126 = vmatpush1.msra.mxu0 0.0
    %1127 = vmatprep.subr.mxu0 0.0
    %1128 = vmatpush1.msra.mxu0 0.0
    %1129 = vmatprep.subr.mxu0 0.0
    %1130 = vmatpush1.msra.mxu0 0.0
    %1131 = vmatprep.subr.mxu0 0.0
    %1132 = vmatpush1.msra.mxu0 0.0
    %1133 = vmatprep.subr.mxu0 0.0
    %1134 = vmatpush1.msra.mxu0 0.0
    %1135 = vmatprep.subr.mxu0 0.0
    %1136 = vmatpush1.msra.mxu0 0.0
    %1137 = vmatprep.mubr.f32.mxu0 0.0
    %1138 = vmatmul.mubr.f32.gmra.mrb[0].mxu0 %v984
    %v1139 = vpop.f32.mrb[0].mxu0
    %v1140 = vadd.f32 %v1056, %v1139
    %v1141 = vpop.f32.mrb[0].mxu0
    %v1142 = vadd.f32 %v1060, %v1141
    %1143 = vdwg.mxu0
    %1144 = vmatprep.subr.mxu0 %v989
    %1145 = vmatpush1.msra.mxu0 %v988
    %1146 = vmatprep.subr.mxu0 %v993
    %1147 = vmatpush1.msra.mxu0 %v992
    %1148 = vmatprep.subr.mxu0 %v997
    %1149 = vmatpush1.msra.mxu0 %v996
    %1150 = vmatprep.subr.mxu0 %v1001
    %1151 = vmatpush1.msra.mxu0 %v1000
    %1152 = vmatprep.subr.mxu0 %v1005
    %1153 = vmatpush1.msra.mxu0 %v1004
    %1154 = vmatprep.subr.mxu0 %v1009
    %1155 = vmatpush1.msra.mxu0 %v1008
    %1156 = vmatprep.subr.mxu0 %v1013
    %1157 = vmatpush1.msra.mxu0 %v1012
    %1158 = vmatprep.subr.mxu0 %v1017
    %1159 = vmatpush1.msra.mxu0 %v1016
    %1160 = vmatprep.subr.mxu0 %v1021
    %1161 = vmatpush1.msra.mxu0 %v1020
    %1162 = vmatprep.subr.mxu0 %v1025
    %1163 = vmatpush1.msra.mxu0 %v1024
    %1164 = vmatprep.subr.mxu0 %v1029
    %1165 = vmatpush1.msra.mxu0 %v1028
    %1166 = vmatprep.subr.mxu0 %v1033
    %1167 = vmatpush1.msra.mxu0 %v1032
    %1168 = vmatprep.subr.mxu0 %v1037
    %1169 = vmatpush1.msra.mxu0 %v1036
    %1170 = vmatprep.subr.mxu0 %v1041
    %1171 = vmatpush1.msra.mxu0 %v1040
    %1172 = vmatprep.subr.mxu0 %v1045
    %1173 = vmatpush1.msra.mxu0 %v1044
    %1174 = vmatprep.subr.mxu0 %v1049
    %1175 = vmatpush1.msra.mxu0 %v1048
    %1176 = vmatprep.subr.mxu0 0.0
    %1177 = vmatpush1.msra.mxu0 0.0
    %1178 = vmatprep.subr.mxu0 0.0
    %1179 = vmatpush1.msra.mxu0 0.0
    %1180 = vmatprep.subr.mxu0 0.0
    %1181 = vmatpush1.msra.mxu0 0.0
    %1182 = vmatprep.subr.mxu0 0.0
    %1183 = vmatpush1.msra.mxu0 0.0
    %1184 = vmatprep.subr.mxu0 0.0
    %1185 = vmatpush1.msra.mxu0 0.0
    %1186 = vmatprep.subr.mxu0 0.0
    %1187 = vmatpush1.msra.mxu0 0.0
    %1188 = vmatprep.subr.mxu0 0.0
    %1189 = vmatpush1.msra.mxu0 0.0
    %1190 = vmatprep.subr.mxu0 0.0
    %1191 = vmatpush1.msra.mxu0 0.0
    %1192 = vmatprep.subr.mxu0 0.0
    %1193 = vmatpush1.msra.mxu0 0.0
    %1194 = vmatprep.subr.mxu0 0.0
    %1195 = vmatpush1.msra.mxu0 0.0
    %1196 = vmatprep.subr.mxu0 0.0
    %1197 = vmatpush1.msra.mxu0 0.0
    %1198 = vmatprep.subr.mxu0 0.0
    %1199 = vmatpush1.msra.mxu0 0.0
    %1200 = vmatprep.subr.mxu0 0.0
    %1201 = vmatpush1.msra.mxu0 0.0
    %1202 = vmatprep.subr.mxu0 0.0
    %1203 = vmatpush1.msra.mxu0 0.0
    %1204 = vmatprep.subr.mxu0 0.0
    %1205 = vmatpush1.msra.mxu0 0.0
    %1206 = vmatprep.subr.mxu0 0.0
    %1207 = vmatpush1.msra.mxu0 0.0
    %1208 = vmatprep.mubr.f32.mxu0 0.0
    %1209 = vmatmul.mubr.f32.gmra.mrb[0].mxu0 %v984
    %v1210 = vpop.f32.mrb[0].mxu0
    %v1211 = vadd.f32 %v1064, %v1210
    %v1212 = vpop.f32.mrb[0].mxu0
    %v1213 = vadd.f32 %v1068, %v1212
    %1214 = vdwg.mxu0
    %v1215 = vmul.f32 %v518, %v1140
    %v1216 = vmul.f32 %v522, %v1142
    %v1217 = vadd.f32 %v1215, %v1216
    %v1218 = vmul.f32 %v526, %v1211
    %v1219 = vadd.f32 %v1217, %v1218
    %v1220 = vmul.f32 %v530, %v1213
    %v1221 = vadd.f32 %v1219, %v1220
    %vm1222 = vcmp.gt.f32.partialorder %v1221, 0.0
    %v1223 = vmin.f32 %v1221, 0.0
    %v1224 = vmul.f32 %v1223, 1.442695
    %v1225 = vpow.pop %v1224
    %v1226 = vsub.f32 %v1225, 1.0
    %v1227 = vsel %vm1222, %v1221, %v1226
    %s1228 = scalar_lea.vmem [#allocation2], 1536
    %v1229 = vld [vmem:[%s1228] sm:$0xff]
    %v1230 = vld [vmem:[%s1228 + $0x8] sm:$0xff]
    %v1231 = vld [vmem:[%s1228 + $0x10] sm:$0xff]
    %v1232 = vld [vmem:[%s1228 + $0x18] sm:$0xff]
    %v1233 = vld [vmem:[%s1228 + $0x20] sm:$0xff]
    %v1234 = vld [vmem:[%s1228 + $0x28] sm:$0xff]
    %v1235 = vld [vmem:[%s1228 + $0x30] sm:$0xff]
    %v1236 = vld [vmem:[%s1228 + $0x38] sm:$0xff]
    %v1237 = vld [vmem:[%s1228 + $0x40] sm:$0xff]
    %v1238 = vld [vmem:[%s1228 + $0x48] sm:$0xff]
    %v1239 = vld [vmem:[%s1228 + $0x50] sm:$0xff]
    %v1240 = vld [vmem:[%s1228 + $0x58] sm:$0xff]
    %v1241 = vld [vmem:[%s1228 + $0x60] sm:$0xff]
    %v1242 = vld [vmem:[%s1228 + $0x68] sm:$0xff]
    %v1243 = vld [vmem:[%s1228 + $0x70] sm:$0xff]
    %v1244 = vld [vmem:[%s1228 + $0x78] sm:$0xff]
    %v1245 = vld [vmem:[%s1228 + $0x80] sm:$0xff]
    %v1246 = vld [vmem:[%s1228 + $0x88] sm:$0xff]
    %v1247 = vld [vmem:[%s1228 + $0x90] sm:$0xff]
    %v1248 = vld [vmem:[%s1228 + $0x98] sm:$0xff]
    %v1249 = vld [vmem:[%s1228 + $0xa0] sm:$0xff]
    %v1250 = vld [vmem:[%s1228 + $0xa8] sm:$0xff]
    %v1251 = vld [vmem:[%s1228 + $0xb0] sm:$0xff]
    %v1252 = vld [vmem:[%s1228 + $0xb8] sm:$0xff]
    %v1253 = vld [vmem:[%s1228 + $0xc0] sm:$0xff]
    %v1254 = vld [vmem:[%s1228 + $0xc8] sm:$0xff]
    %v1255 = vld [vmem:[%s1228 + $0xd0] sm:$0xff]
    %v1256 = vld [vmem:[%s1228 + $0xd8] sm:$0xff]
    %v1257 = vld [vmem:[%s1228 + $0xe0] sm:$0xff]
    %v1258 = vld [vmem:[%s1228 + $0xe8] sm:$0xff]
    %v1259 = vld [vmem:[%s1228 + $0xf0] sm:$0xff]
    %v1260 = vld [vmem:[%s1228 + $0xf8] sm:$0xff]
    %v1261 = vld [vmem:[%s1228 + $0x100] sm:$0xff]
    %v1262 = vld [vmem:[%s1228 + $0x108] sm:$0xff]
    %v1263 = vld [vmem:[%s1228 + $0x110] sm:$0xff]
    %v1264 = vld [vmem:[%s1228 + $0x118] sm:$0xff]
    %v1265 = vld [vmem:[%s1228 + $0x120] sm:$0xff]
    %v1266 = vld [vmem:[%s1228 + $0x128] sm:$0xff]
    %v1267 = vld [vmem:[%s1228 + $0x130] sm:$0xff]
    %v1268 = vld [vmem:[%s1228 + $0x138] sm:$0xff]
    %v1269 = vld [vmem:[%s1228 + $0x140] sm:$0xff]
    %v1270 = vld [vmem:[%s1228 + $0x148] sm:$0xff]
    %v1271 = vld [vmem:[%s1228 + $0x150] sm:$0xff]
    %v1272 = vld [vmem:[%s1228 + $0x158] sm:$0xff]
    %v1273 = vld [vmem:[%s1228 + $0x160] sm:$0xff]
    %v1274 = vld [vmem:[%s1228 + $0x168] sm:$0xff]
    %v1275 = vld [vmem:[%s1228 + $0x170] sm:$0xff]
    %v1276 = vld [vmem:[%s1228 + $0x178] sm:$0xff]
    %v1277 = vld [vmem:[%s1228 + $0x180] sm:$0xff]
    %v1278 = vld [vmem:[%s1228 + $0x188] sm:$0xff]
    %v1279 = vld [vmem:[%s1228 + $0x190] sm:$0xff]
    %v1280 = vld [vmem:[%s1228 + $0x198] sm:$0xff]
    %v1281 = vld [vmem:[%s1228 + $0x1a0] sm:$0xff]
    %v1282 = vld [vmem:[%s1228 + $0x1a8] sm:$0xff]
    %v1283 = vld [vmem:[%s1228 + $0x1b0] sm:$0xff]
    %v1284 = vld [vmem:[%s1228 + $0x1b8] sm:$0xff]
    %v1285 = vld [vmem:[%s1228 + $0x1c0] sm:$0xff]
    %v1286 = vld [vmem:[%s1228 + $0x1c8] sm:$0xff]
    %v1287 = vld [vmem:[%s1228 + $0x1d0] sm:$0xff]
    %v1288 = vld [vmem:[%s1228 + $0x1d8] sm:$0xff]
    %v1289 = vld [vmem:[%s1228 + $0x1e0] sm:$0xff]
    %v1290 = vld [vmem:[%s1228 + $0x1e8] sm:$0xff]
    %v1291 = vld [vmem:[%s1228 + $0x1f0] sm:$0xff]
    %v1292 = vld [vmem:[%s1228 + $0x1f8] sm:$0xff]
    %s1293 = scalar_lea.vmem %s4, 35
    %v1294 = vld [vmem:[%s1293] ss:$8 sm:$0xf]
    %v1296 = vlaneseq
    %v1297 = vshrl.u32 %v1296, 7
    %v1298 = vsub.s32 0, %v1297
    %v1299 = vrot.slane %v1294, %v1298
    %v1300 = vlaneseq
    %v1301 = vshrl.u32 %v1300, 7
    %v1302 = vsub.s32 1, %v1301
    %v1303 = vrot.slane %v1294, %v1302
    %v1304 = vlaneseq
    %v1305 = vshrl.u32 %v1304, 7
    %v1306 = vsub.s32 2, %v1305
    %v1307 = vrot.slane %v1294, %v1306
    %v1308 = vlaneseq
    %v1309 = vshrl.u32 %v1308, 7
    %v1310 = vsub.s32 3, %v1309
    %v1311 = vrot.slane %v1294, %v1310
    %1316 = vmatprep.subr.mxu0 %v1230
    %1317 = vmatpush1.msra.mxu0 %v1229
    %1318 = vmatprep.subr.mxu0 %v1234
    %1319 = vmatpush1.msra.mxu0 %v1233
    %1320 = vmatprep.subr.mxu0 %v1238
    %1321 = vmatpush1.msra.mxu0 %v1237
    %1322 = vmatprep.subr.mxu0 %v1242
    %1323 = vmatpush1.msra.mxu0 %v1241
    %1324 = vmatprep.subr.mxu0 %v1246
    %1325 = vmatpush1.msra.mxu0 %v1245
    %1326 = vmatprep.subr.mxu0 %v1250
    %1327 = vmatpush1.msra.mxu0 %v1249
    %1328 = vmatprep.subr.mxu0 %v1254
    %1329 = vmatpush1.msra.mxu0 %v1253
    %1330 = vmatprep.subr.mxu0 %v1258
    %1331 = vmatpush1.msra.mxu0 %v1257
    %1332 = vmatprep.subr.mxu0 %v1262
    %1333 = vmatpush1.msra.mxu0 %v1261
    %1334 = vmatprep.subr.mxu0 %v1266
    %1335 = vmatpush1.msra.mxu0 %v1265
    %1336 = vmatprep.subr.mxu0 %v1270
    %1337 = vmatpush1.msra.mxu0 %v1269
    %1338 = vmatprep.subr.mxu0 %v1274
    %1339 = vmatpush1.msra.mxu0 %v1273
    %1340 = vmatprep.subr.mxu0 %v1278
    %1341 = vmatpush1.msra.mxu0 %v1277
    %1342 = vmatprep.subr.mxu0 %v1282
    %1343 = vmatpush1.msra.mxu0 %v1281
    %1344 = vmatprep.subr.mxu0 %v1286
    %1345 = vmatpush1.msra.mxu0 %v1285
    %1346 = vmatprep.subr.mxu0 %v1290
    %1347 = vmatpush1.msra.mxu0 %v1289
    %1348 = vmatprep.subr.mxu0 0.0
    %1349 = vmatpush1.msra.mxu0 0.0
    %1350 = vmatprep.subr.mxu0 0.0
    %1351 = vmatpush1.msra.mxu0 0.0
    %1352 = vmatprep.subr.mxu0 0.0
    %1353 = vmatpush1.msra.mxu0 0.0
    %1354 = vmatprep.subr.mxu0 0.0
    %1355 = vmatpush1.msra.mxu0 0.0
    %1356 = vmatprep.subr.mxu0 0.0
    %1357 = vmatpush1.msra.mxu0 0.0
    %1358 = vmatprep.subr.mxu0 0.0
    %1359 = vmatpush1.msra.mxu0 0.0
    %1360 = vmatprep.subr.mxu0 0.0
    %1361 = vmatpush1.msra.mxu0 0.0
    %1362 = vmatprep.subr.mxu0 0.0
    %1363 = vmatpush1.msra.mxu0 0.0
    %1364 = vmatprep.subr.mxu0 0.0
    %1365 = vmatpush1.msra.mxu0 0.0
    %1366 = vmatprep.subr.mxu0 0.0
    %1367 = vmatpush1.msra.mxu0 0.0
    %1368 = vmatprep.subr.mxu0 0.0
    %1369 = vmatpush1.msra.mxu0 0.0
    %1370 = vmatprep.subr.mxu0 0.0
    %1371 = vmatpush1.msra.mxu0 0.0
    %1372 = vmatprep.subr.mxu0 0.0
    %1373 = vmatpush1.msra.mxu0 0.0
    %1374 = vmatprep.subr.mxu0 0.0
    %1375 = vmatpush1.msra.mxu0 0.0
    %1376 = vmatprep.subr.mxu0 0.0
    %1377 = vmatpush1.msra.mxu0 0.0
    %1378 = vmatprep.subr.mxu0 0.0
    %1379 = vmatpush1.msra.mxu0 0.0
    %1380 = vmatprep.mubr.f32.mxu0 0.0
    %1381 = vmatmul.mubr.f32.gmra.mrb[0].mxu0 %v1227
    %v1382 = vpop.f32.mrb[0].mxu0
    %v1383 = vadd.f32 %v1299, %v1382
    %v1384 = vpop.f32.mrb[0].mxu0
    %v1385 = vadd.f32 %v1303, %v1384
    %1386 = vdwg.mxu0
    %1387 = vmatprep.subr.mxu0 %v1232
    %1388 = vmatpush1.msra.mxu0 %v1231
    %1389 = vmatprep.subr.mxu0 %v1236
    %1390 = vmatpush1.msra.mxu0 %v1235
    %1391 = vmatprep.subr.mxu0 %v1240
    %1392 = vmatpush1.msra.mxu0 %v1239
    %1393 = vmatprep.subr.mxu0 %v1244
    %1394 = vmatpush1.msra.mxu0 %v1243
    %1395 = vmatprep.subr.mxu0 %v1248
    %1396 = vmatpush1.msra.mxu0 %v1247
    %1397 = vmatprep.subr.mxu0 %v1252
    %1398 = vmatpush1.msra.mxu0 %v1251
    %1399 = vmatprep.subr.mxu0 %v1256
    %1400 = vmatpush1.msra.mxu0 %v1255
    %1401 = vmatprep.subr.mxu0 %v1260
    %1402 = vmatpush1.msra.mxu0 %v1259
    %1403 = vmatprep.subr.mxu0 %v1264
    %1404 = vmatpush1.msra.mxu0 %v1263
    %1405 = vmatprep.subr.mxu0 %v1268
    %1406 = vmatpush1.msra.mxu0 %v1267
    %1407 = vmatprep.subr.mxu0 %v1272
    %1408 = vmatpush1.msra.mxu0 %v1271
    %1409 = vmatprep.subr.mxu0 %v1276
    %1410 = vmatpush1.msra.mxu0 %v1275
    %1411 = vmatprep.subr.mxu0 %v1280
    %1412 = vmatpush1.msra.mxu0 %v1279
    %1413 = vmatprep.subr.mxu0 %v1284
    %1414 = vmatpush1.msra.mxu0 %v1283
    %1415 = vmatprep.subr.mxu0 %v1288
    %1416 = vmatpush1.msra.mxu0 %v1287
    %1417 = vmatprep.subr.mxu0 %v1292
    %1418 = vmatpush1.msra.mxu0 %v1291
    %1419 = vmatprep.subr.mxu0 0.0
    %1420 = vmatpush1.msra.mxu0 0.0
    %1421 = vmatprep.subr.mxu0 0.0
    %1422 = vmatpush1.msra.mxu0 0.0
    %1423 = vmatprep.subr.mxu0 0.0
    %1424 = vmatpush1.msra.mxu0 0.0
    %1425 = vmatprep.subr.mxu0 0.0
    %1426 = vmatpush1.msra.mxu0 0.0
    %1427 = vmatprep.subr.mxu0 0.0
    %1428 = vmatpush1.msra.mxu0 0.0
    %1429 = vmatprep.subr.mxu0 0.0
    %1430 = vmatpush1.msra.mxu0 0.0
    %1431 = vmatprep.subr.mxu0 0.0
    %1432 = vmatpush1.msra.mxu0 0.0
    %1433 = vmatprep.subr.mxu0 0.0
    %1434 = vmatpush1.msra.mxu0 0.0
    %1435 = vmatprep.subr.mxu0 0.0
    %1436 = vmatpush1.msra.mxu0 0.0
    %1437 = vmatprep.subr.mxu0 0.0
    %1438 = vmatpush1.msra.mxu0 0.0
    %1439 = vmatprep.subr.mxu0 0.0
    %1440 = vmatpush1.msra.mxu0 0.0
    %1441 = vmatprep.subr.mxu0 0.0
    %1442 = vmatpush1.msra.mxu0 0.0
    %1443 = vmatprep.subr.mxu0 0.0
    %1444 = vmatpush1.msra.mxu0 0.0
    %1445 = vmatprep.subr.mxu0 0.0
    %1446 = vmatpush1.msra.mxu0 0.0
    %1447 = vmatprep.subr.mxu0 0.0
    %1448 = vmatpush1.msra.mxu0 0.0
    %1449 = vmatprep.subr.mxu0 0.0
    %1450 = vmatpush1.msra.mxu0 0.0
    %1451 = vmatprep.mubr.f32.mxu0 0.0
    %1452 = vmatmul.mubr.f32.gmra.mrb[0].mxu0 %v1227
    %v1453 = vpop.f32.mrb[0].mxu0
    %v1454 = vadd.f32 %v1307, %v1453
    %v1455 = vpop.f32.mrb[0].mxu0
    %v1456 = vadd.f32 %v1311, %v1455
    %1457 = vdwg.mxu0
    %v1458 = vmul.f32 %v518, %v1383
    %v1459 = vmul.f32 %v522, %v1385
    %v1460 = vadd.f32 %v1458, %v1459
    %v1461 = vmul.f32 %v526, %v1454
    %v1462 = vadd.f32 %v1460, %v1461
    %v1463 = vmul.f32 %v530, %v1456
    %v1464 = vadd.f32 %v1462, %v1463
    %1465 = vst [vmem:[#allocation5] sm:$0xff] %v1464
    // Predicated region
    $region26: #{tpu_custom_call.1} parent=1 // pred_check
      _
    $region27: #{tpu_custom_call.1} parent=1 // pred_check_branch
      %1467 = sbr.rel (0) target = $region29
    $region28: #{tpu_custom_call.1} parent=1 // pred_region
      %s1469 = ssub.s32 128, 128
      %1470 = vsyncadd [#allocation4], %s1469
      %s1472 = sshll.u32 [#allocation5], 4
      %s1473 = int_to_ptr.vmem [resolvable:$true] %s1472
      %1475 = dma.vmem_to_hbm [thread:$0]  %s1473, 128, %s5, [#allocation4]
    $region29: #{tpu_custom_call.1} parent=1 // pred_fallthru
      _
    // Predicated region
    $region30: #{tpu_custom_call.1} parent=1 // pred_check
      _
    $region31: #{tpu_custom_call.1} parent=1 // pred_check_branch
      %1477 = sbr.rel (0) target = $region33
    $region32: #{tpu_custom_call.1} parent=1 // pred_region
      %1478 = dma.done [#allocation4], 128
    $region33: #{tpu_custom_call.1} parent=1 // pred_fallthru
      _
    %1479 = vsyncpa [#allocation3], 1
    %1480 = vsyncpa [#allocation4], 1

</llo_original>
